<compile_context>
chip_gen: v7x
topology: tpu7x:2x2x1
jax: 0.10.0
libtpu: 0.0.40
codegen_flags: <defaults>
</compile_context>

<pallas_src>
import functools

import jax
import jax.numpy as jnp
from jax.experimental import pallas as pl
from jax.experimental.pallas import tpu as pltpu

K1, C_IN, C_MID = 11, 3, 32
K2, C_OUT = 3, 1
PAD1, PAD2 = 5, 1


def _banded_weights(w, width, pad):
    """Fold the (kw, C_in) taps of a conv kernel into a banded matmul weight.

    w: (Kh, Kw, Cin, Cout).  Returns B with shape (Kh, width*Cin, width*Cout):
      B[kh, ws*Cin + ci, wo*Cout + co] = w[kh, ws - wo + pad, ci, co]
    (zero outside the band), so a row x[h, ws*Cin + ci] matmul'd with B[kh]
    gives the conv contribution of input row h at vertical tap kh, with the
    zero padding along W baked into the band.
    """
    kh_dim, kw_dim, cin, cout = w.shape
    w_src = jnp.arange(width)[:, None]
    w_out = jnp.arange(width)[None, :]
    kw_idx = w_src - w_out + pad                        # (width, width)
    valid = (kw_idx >= 0) & (kw_idx < kw_dim)
    kw_safe = jnp.clip(kw_idx, 0, kw_dim - 1)
    taps = w[:, kw_safe, :, :]                          # (Kh, width, width, Cin, Cout)
    taps = jnp.where(valid[None, :, :, None, None], taps, 0.0)
    taps = jnp.transpose(taps, (0, 1, 3, 2, 4))         # (Kh, ws, Cin, wo, Cout)
    return taps.reshape(kh_dim, width * cin, width * cout)


def _two_conv_kernel(x_ref, w1_ref, b1_ref, w2_ref, b2_ref, o_ref, *,
                     Nb, H, W, nonlinearity, approximate_gelu):
    # x_ref : (Nb*H, K1*W*C_IN)   bf16  im2row LHS (vertical taps in contraction)
    # w1_ref: (K1*W*C_IN, W*C_MID) bf16  stacked banded conv1 weights
    # b1_ref: (1, W*C_MID)         f32   conv1 bias tiled over w
    # w2_ref: (W*C_MID, K2*W)      bf16  banded conv2 weights, cols = (kh, w)
    # b2_ref: (1, 1)               f32
    # o_ref : (Nb, H*W)            f32   lane-dense output block

    # ---- conv1: one MXU matmul, K = K1*W*C_IN = 528 ----
    h1 = jnp.dot(x_ref[...], w1_ref[...], preferred_element_type=jnp.float32)
    h1 = h1 + b1_ref[...]
    if nonlinearity == "relu":
        h1 = jnp.maximum(h1, 0.0)
    else:
        # exact erf matches nn.GELU(); approximate=True routes tanh to the EUP
        h1 = jax.nn.gelu(h1, approximate=approximate_gelu)
    h1 = h1.astype(jnp.bfloat16)

    # ---- conv2: one banded matmul; result columns indexed (kh, w) ----
    q = jnp.dot(h1, w2_ref[...], preferred_element_type=jnp.float32)  # (M, K2*W)
    q = q.reshape(Nb, H, K2 * W)
    q0 = q[:, :, 0 * W:1 * W]
    q1 = q[:, :, 1 * W:2 * W]
    q2 = q[:, :, 2 * W:3 * W]

    # Vertical halo in registers: out[h] = q0[h-1] + q1[h] + q2[h+1].
    zrow = jnp.zeros((Nb, 1, W), jnp.float32)
    above = jnp.concatenate([zrow, q0[:, :H - 1, :]], axis=1)
    below = jnp.concatenate([q2[:, 1:, :], zrow], axis=1)
    out = jnp.tanh(q1 + above + below + b2_ref[...])

    # Single lane-dense store.
    o_ref[...] = out.reshape(Nb, H * W)


def two_conv_layers(x, params, nonlinearity="relu", time_axis=True,
                    approximate_gelu=False):
    """x: (B, T, 3, H, W) if time_axis else (N, 3, H, W); returns the module's
    convention with 1 output channel: (B, T, 1, H, W) / (N, 1, H, W)."""
    if time_axis:
        shape = x.shape
        x = x.reshape((shape[0] * shape[1],) + shape[2:])
    N, C, H, W = x.shape
    assert C == C_IN
    w1, b1, w2, b2 = params

    # Images per grid step: M = nb*H ~ 256 rows, nb a multiple of 8 (aligned
    # output blocks; batch zero-padded), and >= 2 grid steps when the batch
    # allows so the "parallel" axis can split across v7x's two TensorCores.
    nb = 256 // max(H, 1)
    nb = max(8, (nb // 8) * 8)
    nb = min(nb, max(8, -(-N // 8) * 8))          # don't over-pad tiny batches
    half = (N // 2 // 8) * 8
    if half >= 8:
        nb = min(nb, half)
    n_pad = -(-N // nb) * nb

    kdim = K1 * W * C_IN
    cols1 = W * C_MID
    cols2 = K2 * W * C_OUT

    # Input: im2row rows carrying the full (kh, w, c_in) contraction.
    # Only H padding is materialized; W padding is baked into the band matrix.
    x_nhwc = jnp.transpose(x, (0, 2, 3, 1)).astype(jnp.float32)
    if n_pad != N:
        x_nhwc = jnp.pad(x_nhwc, ((0, n_pad - N), (0, 0), (0, 0), (0, 0)))
    x_rows = x_nhwc.reshape(n_pad, H, W * C_IN)
    x_rows = jnp.pad(x_rows, ((0, 0), (PAD1, PAD1), (0, 0)))
    x_lhs = jnp.concatenate([x_rows[:, kh:kh + H, :] for kh in range(K1)],
                            axis=-1)                              # (n_pad, H, kdim)
    x_lhs = x_lhs.reshape(n_pad * H, kdim).astype(jnp.bfloat16)

    # Banded weights, built in f32 then cast to bf16 for the MXU.
    w1b = _banded_weights(w1.astype(jnp.float32), W, PAD1)        # (K1, W*Cin, W*Cmid)
    w1b = w1b.reshape(kdim, cols1).astype(jnp.bfloat16)           # stacked over kh
    w2b = _banded_weights(w2.astype(jnp.float32), W, PAD2)        # (K2, W*Cmid, W*Cout)
    w2b = jnp.transpose(w2b, (1, 0, 2)).reshape(cols1, cols2).astype(jnp.bfloat16)
    b1_t = jnp.tile(jnp.reshape(b1, (1, C_MID)).astype(jnp.float32), (1, W))
    b2_s = jnp.reshape(b2, (1, 1)).astype(jnp.float32)

    # Single-buffer the constant operands once the O(W^2) band is big enough
    # to matter (v5e/v7x scoped-VMEM headroom at fitvid-scale W >= 64).
    const_kw = {"pipeline_mode": pl.Buffered(1)} if W >= 32 else {}

    kern = functools.partial(_two_conv_kernel, Nb=nb, H=H, W=W,
                             nonlinearity=nonlinearity,
                             approximate_gelu=approximate_gelu)

    out = pl.pallas_call(
        kern,
        out_shape=jax.ShapeDtypeStruct((n_pad, H * W), jnp.float32),
        grid_spec=pltpu.PrefetchScalarGridSpec(
            num_scalar_prefetch=0,
            grid=(n_pad // nb,),
            in_specs=[
                pl.BlockSpec((nb * H, kdim), lambda n: (n, 0)),
                pl.BlockSpec((kdim, cols1), lambda n: (0, 0), **const_kw),
                pl.BlockSpec((1, cols1), lambda n: (0, 0), **const_kw),
                pl.BlockSpec((cols1, cols2), lambda n: (0, 0), **const_kw),
                pl.BlockSpec((1, 1), lambda n: (0, 0), **const_kw),
            ],
            out_specs=pl.BlockSpec((nb, H * W), lambda n: (n, 0)),
        ),
        compiler_params=pltpu.CompilerParams(
            dimension_semantics=("parallel",),
            vmem_limit_bytes=32 * 1024 * 1024),
    )(x_lhs, w1b, b1_t, w2b, b2_s)

    out = out[:N].reshape(N, C_OUT, H, W)         # free reshape: no transpose
    if time_axis:
        out = out.reshape((shape[0], shape[1], C_OUT, H, W))
    return out


def init_params(key):
    """Deterministic PyTorch-default-style init (uniform(-1/sqrt(fan_in), ...))."""
    k1, k2, k3, k4 = jax.random.split(key, 4)
    bound1 = 1.0 / float(jnp.sqrt(C_IN * K1 * K1))
    w1 = jax.random.uniform(k1, (K1, K1, C_IN, C_MID), jnp.float32,
                            -bound1, bound1)
    b1 = jax.random.uniform(k2, (1, C_MID), jnp.float32, -bound1, bound1)
    bound2 = 1.0 / float(jnp.sqrt(C_MID * K2 * K2))
    w2 = jax.random.uniform(k3, (K2, K2, C_MID, C_OUT), jnp.float32,
                            -bound2, bound2)
    b2 = jax.random.uniform(k4, (1, C_OUT), jnp.float32, -bound2, bound2)
    return w1, b1, w2, b2


def reference(x, params, nonlinearity="relu", time_axis=True):
    """Pure-JAX reference (lax convolutions) for numerical checking."""
    if time_axis:
        shape = x.shape
        x = x.reshape((shape[0] * shape[1],) + shape[2:])
    w1, b1, w2, b2 = params
    xn = jnp.transpose(x, (0, 2, 3, 1)).astype(jnp.float32)
    h = jax.lax.conv_general_dilated(
        xn, w1, (1, 1), [(PAD1, PAD1), (PAD1, PAD1)],
        dimension_numbers=("NHWC", "HWIO", "NHWC"),
        precision=jax.lax.Precision.HIGHEST) + b1.reshape(1, 1, 1, C_MID)
    h = jnp.maximum(h, 0.0) if nonlinearity == "relu" else jax.nn.gelu(
        h, approximate=False)
    o = jax.lax.conv_general_dilated(
        h, w2, (1, 1), [(PAD2, PAD2), (PAD2, PAD2)],
        dimension_numbers=("NHWC", "HWIO", "NHWC"),
        precision=jax.lax.Precision.HIGHEST) + b2.reshape(1, 1, 1, C_OUT)
    o = jnp.tanh(o)
    o = jnp.transpose(o, (0, 3, 1, 2))
    if time_axis:
        o = o.reshape((shape[0], shape[1]) + o.shape[1:])
    return o


if __name__ == "__main__":
    key = jax.random.PRNGKey(0)
    kx, kp = jax.random.split(key)

    B, T, H, W = 2, 8, 16, 16      # N = B*T = 16 images -> nb = 8, grid = (2,)
    x = jax.random.normal(kx, (B, T, C_IN, H, W), jnp.float32)
    params = init_params(kp)

    out = two_conv_layers(x, params, nonlinearity="relu", time_axis=True)
    out = jax.block_until_ready(out)
    assert out.shape == (B, T, C_OUT, H, W), out.shape

    ref = jax.block_until_ready(
        reference(x, params, nonlinearity="relu", time_axis=True))
    err = float(jnp.max(jnp.abs(out - ref)))
    assert err < 1e-2, f"max abs err {err}"

    print("KERNEL_OK")
</pallas_src>

<mosaic_0001>
module attributes {stable_mosaic.version = 11 : i64} {
  func.func @_two_conv_kernel(%arg0: i32, %arg1: memref<128x528xbf16, #tpu.memory_space<vmem>>, %arg2: memref<528x512xbf16, #tpu.memory_space<vmem>>, %arg3: memref<1x512xf32, #tpu.memory_space<vmem>>, %arg4: memref<512x48xbf16, #tpu.memory_space<vmem>>, %arg5: memref<1x1xf32, #tpu.memory_space<vmem>>, %arg6: memref<8x256xf32, #tpu.memory_space<vmem>>) attributes {dimension_semantics = [#tpu.dimension_semantics<parallel>], iteration_bounds = array<i64: 2>, scalar_prefetch = 0 : i64, scratch_operands = 0 : i64, tpu.core_type = #tpu.core_type<tc>, window_params = [{transform_indices = @transform_0, window_bounds = array<i64: 128, 528>}, {pipeline_mode = #tpu.pipeline_mode<synchronous>, transform_indices = @transform_1, window_bounds = array<i64: 528, 512>}, {pipeline_mode = #tpu.pipeline_mode<synchronous>, transform_indices = @transform_2, window_bounds = array<i64: 1, 512>}, {pipeline_mode = #tpu.pipeline_mode<synchronous>, transform_indices = @transform_3, window_bounds = array<i64: 512, 48>}, {pipeline_mode = #tpu.pipeline_mode<synchronous>, transform_indices = @transform_4, window_bounds = array<i64: 1, 1>}, {transform_indices = @transform_5, window_bounds = array<i64: 8, 256>}]} {
    %c0 = arith.constant 0 : index
    %c0_0 = arith.constant 0 : index
    %0 = vector.load %arg1[%c0, %c0_0] : memref<128x528xbf16, #tpu.memory_space<vmem>>, vector<128x528xbf16>
    %c0_1 = arith.constant 0 : index
    %c0_2 = arith.constant 0 : index
    %1 = vector.load %arg2[%c0_1, %c0_2] : memref<528x512xbf16, #tpu.memory_space<vmem>>, vector<528x512xbf16>
    %cst = arith.constant dense<0.000000e+00> : vector<128x512xf32>
    %2 = tpu.matmul %0, %1, %cst {dimension_numbers = #tpu.dot_dimension_numbers<[1], [0], [0], [1], [0, 0, 1, 1], [], []>} : vector<128x528xbf16>, vector<528x512xbf16>, vector<128x512xf32> -> vector<128x512xf32>
    %c0_3 = arith.constant 0 : index
    %c0_4 = arith.constant 0 : index
    %3 = vector.load %arg3[%c0_3, %c0_4] : memref<1x512xf32, #tpu.memory_space<vmem>>, vector<1x512xf32>
    %4 = vector.broadcast %3 : vector<1x512xf32> to vector<128x512xf32>
    %5 = arith.addf %2, %4 : vector<128x512xf32>
    %cst_5 = arith.constant 0.000000e+00 : f32
    %6 = vector.broadcast %cst_5 : f32 to vector<128x512xf32>
    %7 = arith.maximumf %5, %6 : vector<128x512xf32>
    %8 = arith.truncf %7 : vector<128x512xf32> to vector<128x512xbf16>
    %c0_6 = arith.constant 0 : index
    %c0_7 = arith.constant 0 : index
    %9 = vector.load %arg4[%c0_6, %c0_7] : memref<512x48xbf16, #tpu.memory_space<vmem>>, vector<512x48xbf16>
    %cst_8 = arith.constant dense<0.000000e+00> : vector<128x48xf32>
    %10 = tpu.matmul %8, %9, %cst_8 {dimension_numbers = #tpu.dot_dimension_numbers<[1], [0], [0], [1], [0, 0, 1, 1], [], []>} : vector<128x512xbf16>, vector<512x48xbf16>, vector<128x48xf32> -> vector<128x48xf32>
    %11 = vector.shape_cast %10 : vector<128x48xf32> to vector<8x16x48xf32>
    %12 = vector.extract_strided_slice %11 {offsets = [0, 0, 0], sizes = [8, 16, 16], strides = [1, 1, 1]} : vector<8x16x48xf32> to vector<8x16x16xf32>
    %13 = vector.extract_strided_slice %11 {offsets = [0, 0, 16], sizes = [8, 16, 16], strides = [1, 1, 1]} : vector<8x16x48xf32> to vector<8x16x16xf32>
    %14 = vector.extract_strided_slice %11 {offsets = [0, 0, 32], sizes = [8, 16, 16], strides = [1, 1, 1]} : vector<8x16x48xf32> to vector<8x16x16xf32>
    %cst_9 = arith.constant 0.000000e+00 : f32
    %15 = vector.broadcast %cst_9 : f32 to vector<8x1x16xf32>
    %16 = vector.extract_strided_slice %12 {offsets = [0, 0, 0], sizes = [8, 15, 16], strides = [1, 1, 1]} : vector<8x16x16xf32> to vector<8x15x16xf32>
    %17 = tpu.concatenate %15, %16 in 1 : vector<8x1x16xf32>, vector<8x15x16xf32> -> vector<8x16x16xf32>
    %18 = vector.extract_strided_slice %14 {offsets = [0, 1, 0], sizes = [8, 15, 16], strides = [1, 1, 1]} : vector<8x16x16xf32> to vector<8x15x16xf32>
    %19 = tpu.concatenate %18, %15 in 1 : vector<8x15x16xf32>, vector<8x1x16xf32> -> vector<8x16x16xf32>
    %20 = arith.addf %13, %17 : vector<8x16x16xf32>
    %21 = arith.addf %20, %19 : vector<8x16x16xf32>
    %c0_10 = arith.constant 0 : index
    %c0_11 = arith.constant 0 : index
    %22 = vector.load %arg5[%c0_10, %c0_11] : memref<1x1xf32, #tpu.memory_space<vmem>>, vector<1x1xf32>
    %23 = vector.shape_cast %22 : vector<1x1xf32> to vector<1x1x1xf32>
    %24 = vector.broadcast %23 : vector<1x1x1xf32> to vector<8x16x16xf32>
    %25 = arith.addf %21, %24 : vector<8x16x16xf32>
    %26 = math.tanh %25 : vector<8x16x16xf32>
    %27 = vector.shape_cast %26 : vector<8x16x16xf32> to vector<8x256xf32>
    %c0_12 = arith.constant 0 : index
    %c0_13 = arith.constant 0 : index
    %28 = vector.load %arg6[%c0_12, %c0_13] : memref<8x256xf32, #tpu.memory_space<vmem>>, vector<8x256xf32>
    tpu.vector_store %arg6[%c0_12, %c0_13], %27 {strides = array<i32>} : memref<8x256xf32, #tpu.memory_space<vmem>>, vector<8x256xf32>,
    return
  }
  func.func @transform_0(%arg0: i32) -> (i32, i32) {
    %c0_i32 = arith.constant 0 : i32
    %c0_i32_0 = arith.constant 0 : i32
    return %arg0, %c0_i32 : i32, i32
  }
  func.func @transform_1(%arg0: i32) -> (i32, i32) {
    %c0_i32 = arith.constant 0 : i32
    %c0_i32_0 = arith.constant 0 : i32
    %c0_i32_1 = arith.constant 0 : i32
    return %c0_i32, %c0_i32_0 : i32, i32
  }
  func.func @transform_2(%arg0: i32) -> (i32, i32) {
    %c0_i32 = arith.constant 0 : i32
    %c0_i32_0 = arith.constant 0 : i32
    %c0_i32_1 = arith.constant 0 : i32
    return %c0_i32, %c0_i32_0 : i32, i32
  }
  func.func @transform_3(%arg0: i32) -> (i32, i32) {
    %c0_i32 = arith.constant 0 : i32
    %c0_i32_0 = arith.constant 0 : i32
    %c0_i32_1 = arith.constant 0 : i32
    return %c0_i32, %c0_i32_0 : i32, i32
  }
  func.func @transform_4(%arg0: i32) -> (i32, i32) {
    %c0_i32 = arith.constant 0 : i32
    %c0_i32_0 = arith.constant 0 : i32
    %c0_i32_1 = arith.constant 0 : i32
    return %c0_i32, %c0_i32_0 : i32, i32
  }
  func.func @transform_5(%arg0: i32) -> (i32, i32) {
    %c0_i32 = arith.constant 0 : i32
    %c0_i32_0 = arith.constant 0 : i32
    return %arg0, %c0_i32 : i32, i32
  }
}

</mosaic_0001>

<llo_original>
// kernel: tpu_custom_call.1
$region0: #{tpu_custom_call.1}
  #allocation0 [shape = 'u32[]', space=smem, size = 0x4, offset = 0x4, fixed_abs, tag = 'smem constant byte address 0x4 - core index']
  #allocation1 [shape = 'u32[144,128]{1,0:T(1,128)}', space=vmem, size = 0x12000, scoped, tag = 'internal scratch']
  #allocation2 [shape = 'f32[1,1]{1,0:T(1,128)S(1)}', space=vmem, size = 0x200, scoped, tag = 'scoped memory for tpu_custom_call.1']
  %s0 = inlined_call_operand.vmem [shape: bf16[256,528], index: 0, kind: input, shape index: {}]
  %s1 = inlined_call_operand.vmem [shape: bf16[528,512], index: 1, kind: input, shape index: {}]
  %s2 = inlined_call_operand.vmem [shape: f32[1,512], index: 2, kind: input, shape index: {}]
  %s3 = inlined_call_operand.vmem [shape: bf16[512,48], index: 3, kind: input, shape index: {}]
  %s4 = inlined_call_operand.<no memory space> [shape: f32[1,1], index: 4, kind: input, shape index: {}]
  %s5 = inlined_call_operand.hbm [shape: f32[16,256], index: 5, kind: output, shape index: {}]
  %s6 = sld [smem:[#allocation0]]
  $region53: #{tpu_custom_call.1} parent=0
    _
  %s8 = ssub.s32 1, %s6
  %s9 = scalar_select 0, %s8, %s6
  %v10 = vstv %s4
  %11 = vst [vmem:[#allocation2] sm:$0x1] %v10
  $region1: #{tpu_custom_call.1} parent=0
    #allocation3 [shape = 'u8[16384]{0}', space=vmem, size = 0x4000, scoped, tag = 'output window, operand 0']
    #allocation4 [shape = 's32[2]{0}', space=sflag, size = 0x8, scoped, tag = 'scoped memory for tpu_custom_call.1']
    %12 = vsyncpa [#allocation4], 0
    %s13 = scalar_lea.sflag [#allocation4], 1
    %14 = vsyncpa %s13, 0
    loop: start=0, step=1, limit=4
    $region2: #{tpu_custom_call.1} parent=1 // loop_pre_header
      _
    $region3: #{tpu_custom_call.1} parent=1 // loop_header
      %s16 = sphi 0, %s20
      %p17 = scmp.ge.s32.totalorder %s16, 4
      %s26 = sphi 0, %s28
      %s29 = sphi 0, %s26
      %s30 = sphi 0, %s29
      %s46 = sphi 0, %s30
      %s50 = sphi 0, %s50
      %s52 = sphi 0, %s50
      %s53 = sphi 0, %s52
      %s67 = sphi 0, %s53
      %s71 = sphi 0, %s71
      %s73 = sphi 0, %s71
      %s74 = sphi 0, %s73
      %s88 = sphi 0, %s74
      %s92 = sphi 0, %s92
      %s94 = sphi 0, %s92
      %s95 = sphi 0, %s94
      %s109 = sphi 0, %s95
      %s113 = sphi 0, %s113
      %s115 = sphi 0, %s113
      %s116 = sphi 0, %s115
      %s130 = sphi 0, %s116
      %s136 = sphi 0, %s138
      %s139 = sphi 0, %s136
      %s140 = sphi 0, %s139
      %s156 = sphi 0, %s140
    $region4: #{tpu_custom_call.1} parent=1 // loop_header_branch
      %19 = sbr.rel (%p17) target = $region8
    $region5: #{tpu_custom_call.1} parent=1 // loop_body
      %s21 = ssub.s32 %s16, 1
      %s22 = ssub.s32 %s16, 2
      %s23 = sadd.s32 %s16, 1
      %s24 = ssub.s32 %s16, %s23
      %p25 = scmp.eq.s32.totalorder %s24, 0
      %s27 = sadd.s32 %s26, 1
      %s28 = scalar_select %p25, %s26, %s27
      %p31 = pneg %p25
      %p32 = scmp.eq.s32.totalorder %s16, 1
      %p33 = por %p31, %p32
      %p34 = scmp.ne.s32.totalorder %s26, %s29
      %p35 = scmp.eq.s32.totalorder %s16, 0
      %p36 = por %p34, %p35
      %p37 = scmp.ne.s32.totalorder %s26, %s29
      %p38 = scmp.eq.s32.totalorder %s21, 1
      %p39 = por %p37, %p38
      %p40 = scmp.ne.s32.totalorder %s29, %s30
      %p41 = scmp.eq.s32.totalorder %s21, 0
      %p42 = por %p40, %p41
      %p43 = scmp.ne.s32.totalorder %s29, %s30
      %p44 = scmp.eq.s32.totalorder %s22, 1
      %p45 = por %p43, %p44
      %p47 = scmp.ne.s32.totalorder %s30, %s46
      %p48 = scmp.eq.s32.totalorder %s22, 0
      %p49 = por %p47, %p48
      %s51 = sadd.s32 %s50, 1
      %p54 = scmp.eq.s32.totalorder %s16, 1
      %p55 = scmp.ne.s32.totalorder %s50, %s52
      %p56 = scmp.eq.s32.totalorder %s16, 0
      %p57 = por %p55, %p56
      %p58 = scmp.ne.s32.totalorder %s50, %s52
      %p59 = scmp.eq.s32.totalorder %s21, 1
      %p60 = por %p58, %p59
      %p61 = scmp.ne.s32.totalorder %s52, %s53
      %p62 = scmp.eq.s32.totalorder %s21, 0
      %p63 = por %p61, %p62
      %p64 = scmp.ne.s32.totalorder %s52, %s53
      %p65 = scmp.eq.s32.totalorder %s22, 1
      %p66 = por %p64, %p65
      %p68 = scmp.ne.s32.totalorder %s53, %s67
      %p69 = scmp.eq.s32.totalorder %s22, 0
      %p70 = por %p68, %p69
      %s72 = sadd.s32 %s71, 1
      %p75 = scmp.eq.s32.totalorder %s16, 1
      %p76 = scmp.ne.s32.totalorder %s71, %s73
      %p77 = scmp.eq.s32.totalorder %s16, 0
      %p78 = por %p76, %p77
      %p79 = scmp.ne.s32.totalorder %s71, %s73
      %p80 = scmp.eq.s32.totalorder %s21, 1
      %p81 = por %p79, %p80
      %p82 = scmp.ne.s32.totalorder %s73, %s74
      %p83 = scmp.eq.s32.totalorder %s21, 0
      %p84 = por %p82, %p83
      %p85 = scmp.ne.s32.totalorder %s73, %s74
      %p86 = scmp.eq.s32.totalorder %s22, 1
      %p87 = por %p85, %p86
      %p89 = scmp.ne.s32.totalorder %s74, %s88
      %p90 = scmp.eq.s32.totalorder %s22, 0
      %p91 = por %p89, %p90
      %s93 = sadd.s32 %s92, 1
      %p96 = scmp.eq.s32.totalorder %s16, 1
      %p97 = scmp.ne.s32.totalorder %s92, %s94
      %p98 = scmp.eq.s32.totalorder %s16, 0
      %p99 = por %p97, %p98
      %p100 = scmp.ne.s32.totalorder %s92, %s94
      %p101 = scmp.eq.s32.totalorder %s21, 1
      %p102 = por %p100, %p101
      %p103 = scmp.ne.s32.totalorder %s94, %s95
      %p104 = scmp.eq.s32.totalorder %s21, 0
      %p105 = por %p103, %p104
      %p106 = scmp.ne.s32.totalorder %s94, %s95
      %p107 = scmp.eq.s32.totalorder %s22, 1
      %p108 = por %p106, %p107
      %p110 = scmp.ne.s32.totalorder %s95, %s109
      %p111 = scmp.eq.s32.totalorder %s22, 0
      %p112 = por %p110, %p111
      %s114 = sadd.s32 %s113, 1
      %p117 = scmp.eq.s32.totalorder %s16, 1
      %p118 = scmp.ne.s32.totalorder %s113, %s115
      %p119 = scmp.eq.s32.totalorder %s16, 0
      %p120 = por %p118, %p119
      %p121 = scmp.ne.s32.totalorder %s113, %s115
      %p122 = scmp.eq.s32.totalorder %s21, 1
      %p123 = por %p121, %p122
      %p124 = scmp.ne.s32.totalorder %s115, %s116
      %p125 = scmp.eq.s32.totalorder %s21, 0
      %p126 = por %p124, %p125
      %p127 = scmp.ne.s32.totalorder %s115, %s116
      %p128 = scmp.eq.s32.totalorder %s22, 1
      %p129 = por %p127, %p128
      %p131 = scmp.ne.s32.totalorder %s116, %s130
      %p132 = scmp.eq.s32.totalorder %s22, 0
      %p133 = por %p131, %p132
      %s134 = ssub.s32 %s16, %s23
      %p135 = scmp.eq.s32.totalorder %s134, 0
      %s137 = sadd.s32 %s136, 1
      %s138 = scalar_select %p135, %s136, %s137
      %p141 = pneg %p135
      %p142 = scmp.eq.s32.totalorder %s16, 1
      %p143 = por %p141, %p142
      %p144 = scmp.ne.s32.totalorder %s136, %s139
      %p145 = scmp.eq.s32.totalorder %s16, 0
      %p146 = por %p144, %p145
      %p147 = scmp.ne.s32.totalorder %s136, %s139
      %p148 = scmp.eq.s32.totalorder %s21, 1
      %p149 = por %p147, %p148
      %p150 = scmp.ne.s32.totalorder %s139, %s140
      %p151 = scmp.eq.s32.totalorder %s21, 0
      %p152 = por %p150, %p151
      %p153 = scmp.ne.s32.totalorder %s139, %s140
      %p154 = scmp.eq.s32.totalorder %s22, 1
      %p155 = por %p153, %p154
      %p157 = scmp.ne.s32.totalorder %s140, %s156
      %p158 = scmp.eq.s32.totalorder %s22, 0
      %p159 = por %p157, %p158
      %p160 = scmp.le.s32.totalorder 1, %s16
      %p161 = scmp.lt.s32.totalorder %s16, 3
      %p162 = pnand %p160, %p161
      %p163 = pneg %p162
      // Predicated region
      $region9: #{tpu_custom_call.1} parent=5 // pred_check
        _
      $region10: #{tpu_custom_call.1} parent=5 // pred_check_branch
        %165 = sbr.rel (%p162) target = $region12
      $region11: #{tpu_custom_call.1} parent=5 // pred_region
        %s166 = ssub.s32 %s16, 1
        // Predicated region
        $region13: #{tpu_custom_call.1} parent=11 // pred_check
          %p167 = pneg %p63
        $region14: #{tpu_custom_call.1} parent=11 // pred_check_branch
          %169 = sbr.rel (%p167) target = $region16
        $region15: #{tpu_custom_call.1} parent=11 // pred_region
          _
        $region16: #{tpu_custom_call.1} parent=11 // pred_fallthru
          _
        // Predicated region
        $region17: #{tpu_custom_call.1} parent=11 // pred_check
          %p170 = pneg %p84
        $region18: #{tpu_custom_call.1} parent=11 // pred_check_branch
          %172 = sbr.rel (%p170) target = $region20
        $region19: #{tpu_custom_call.1} parent=11 // pred_region
          _
        $region20: #{tpu_custom_call.1} parent=11 // pred_fallthru
          _
        // Predicated region
        $region21: #{tpu_custom_call.1} parent=11 // pred_check
          %p173 = pneg %p105
        $region22: #{tpu_custom_call.1} parent=11 // pred_check_branch
          %175 = sbr.rel (%p173) target = $region24
        $region23: #{tpu_custom_call.1} parent=11 // pred_region
          _
        $region24: #{tpu_custom_call.1} parent=11 // pred_fallthru
          _
        // Predicated region
        $region25: #{tpu_custom_call.1} parent=11 // pred_check
          %p176 = pneg %p126
        $region26: #{tpu_custom_call.1} parent=11 // pred_check_branch
          %178 = sbr.rel (%p176) target = $region28
        $region27: #{tpu_custom_call.1} parent=11 // pred_region
          _
        $region28: #{tpu_custom_call.1} parent=11 // pred_fallthru
          _
      $region12: #{tpu_custom_call.1} parent=5 // pred_fallthru
        _
      %p179 = scmp.lt.s32.totalorder %s16, 2
      // Predicated region
      $region29: #{tpu_custom_call.1} parent=5 // pred_check
        %p180 = pneg %p179
      $region30: #{tpu_custom_call.1} parent=5 // pred_check_branch
        %182 = sbr.rel (%p180) target = $region32
      $region31: #{tpu_custom_call.1} parent=5 // pred_region
        // Predicated region
        $region33: #{tpu_custom_call.1} parent=31 // pred_check
          %p183 = pneg %p36
        $region34: #{tpu_custom_call.1} parent=31 // pred_check_branch
          %185 = sbr.rel (%p183) target = $region36
        $region35: #{tpu_custom_call.1} parent=31 // pred_region
          %s186 = smul.u32 16, %s16
          %p187 = scmp.lt.s32.totalorder %s186, 31
          %s188 = scalar_select %p187, %s186, 31
          %s189 = smul.addr %s188, 5
          %s190 = smul.addr %s189, 4
          %s191 = scalar_lea.vmem %s0, %s190
          %s192 = smul.u32 16, %s16
        $region36: #{tpu_custom_call.1} parent=31 // pred_fallthru
          _
      $region32: #{tpu_custom_call.1} parent=5 // pred_fallthru
        _
      %p193 = scmp.le.s32.totalorder 1, %s16
      %p194 = scmp.lt.s32.totalorder %s16, 3
      %p195 = pnand %p193, %p194
      %p196 = pneg %p195
      // Predicated region
      $region37: #{tpu_custom_call.1} parent=5 // pred_check
        _
      $region38: #{tpu_custom_call.1} parent=5 // pred_check_branch
        %198 = sbr.rel (%p195) target = $region40
      $region39: #{tpu_custom_call.1} parent=5 // pred_region
        %s199 = ssub.s32 %s16, 1
        %s200 = smul.u32 16, %s21
        %p201 = scmp.lt.s32.totalorder %s200, 31
        %s202 = scalar_select %p201, %s200, 31
        %s203 = smul.addr %s202, 5
        %s204 = smul.addr %s203, 4
        %s205 = scalar_lea.vmem %s0, %s204
        %p206 = pneg %p42
        %p207 = pneg %p39
        %p208 = pneg %p63
        %p209 = pneg %p60
        %p210 = pneg %p84
        %p211 = pneg %p81
        %p212 = pneg %p105
        %p213 = pneg %p102
        %p214 = pneg %p126
        %p215 = pneg %p123
        %p216 = pneg %p152
        %p217 = pneg %p149
        %s218 = sand.u32 %s139, 1
        %s219 = scalar_lea.sflag [#allocation4], %s218
        %s220 = sand.u32 %s139, 1
        %s221 = smul.addr %s220, 16
        %s222 = scalar_lea.vmem [#allocation3], %s221
        %s223 = smul.u32 16, %s21
        %p224 = scmp.lt.s32.totalorder %s223, 31
        %s225 = scalar_select %p224, %s223, 31
        %s226 = smul.addr %s225, 5
        %s227 = smul.addr %s226, 4
        %s228 = scalar_lea.vmem %s0, %s227
        %s229 = smul.u32 16, %s21
        %v231 = vld [vmem:[%s228] sm:$0xff]
        %v232 = vld [vmem:[%s228 + $0x8] sm:$0xff]
        %v233 = vld [vmem:[%s228 + $0x10] sm:$0xf]
        %v234 = vld [vmem:[%s228 + $0x14] sm:$0xff]
        %v235 = vld [vmem:[%s228 + $0x1c] sm:$0xff]
        %v236 = vld [vmem:[%s228 + $0x24] sm:$0xf]
        %v237 = vld [vmem:[%s228 + $0x28] sm:$0xff]
        %v238 = vld [vmem:[%s228 + $0x30] sm:$0xff]
        %v239 = vld [vmem:[%s228 + $0x38] sm:$0xf]
        %v240 = vld [vmem:[%s228 + $0x3c] sm:$0xff]
        %v241 = vld [vmem:[%s228 + $0x44] sm:$0xff]
        %v242 = vld [vmem:[%s228 + $0x4c] sm:$0xf]
        %v243 = vld [vmem:[%s228 + $0x50] sm:$0xff]
        %v244 = vld [vmem:[%s228 + $0x58] sm:$0xff]
        %v245 = vld [vmem:[%s228 + $0x60] sm:$0xf]
        %v246 = vld [vmem:[%s228 + $0x64] sm:$0xff]
        %v247 = vld [vmem:[%s228 + $0x6c] sm:$0xff]
        %v248 = vld [vmem:[%s228 + $0x74] sm:$0xf]
        %v249 = vld [vmem:[%s228 + $0x78] sm:$0xff]
        %v250 = vld [vmem:[%s228 + $0x80] sm:$0xff]
        %v251 = vld [vmem:[%s228 + $0x88] sm:$0xf]
        %v252 = vld [vmem:[%s228 + $0x8c] sm:$0xff]
        %v253 = vld [vmem:[%s228 + $0x94] sm:$0xff]
        %v254 = vld [vmem:[%s228 + $0x9c] sm:$0xf]
        %v255 = vld [vmem:[%s228 + $0xa0] sm:$0xff]
        %v256 = vld [vmem:[%s228 + $0xa8] sm:$0xff]
        %v257 = vld [vmem:[%s228 + $0xb0] sm:$0xf]
        %v258 = vld [vmem:[%s228 + $0xb4] sm:$0xff]
        %v259 = vld [vmem:[%s228 + $0xbc] sm:$0xff]
        %v260 = vld [vmem:[%s228 + $0xc4] sm:$0xf]
        %v261 = vld [vmem:[%s228 + $0xc8] sm:$0xff]
        %v262 = vld [vmem:[%s228 + $0xd0] sm:$0xff]
        %v263 = vld [vmem:[%s228 + $0xd8] sm:$0xf]
        %v264 = vld [vmem:[%s228 + $0xdc] sm:$0xff]
        %v265 = vld [vmem:[%s228 + $0xe4] sm:$0xff]
        %v266 = vld [vmem:[%s228 + $0xec] sm:$0xf]
        %v267 = vld [vmem:[%s228 + $0xf0] sm:$0xff]
        %v268 = vld [vmem:[%s228 + $0xf8] sm:$0xff]
        %v269 = vld [vmem:[%s228 + $0x100] sm:$0xf]
        %v270 = vld [vmem:[%s228 + $0x104] sm:$0xff]
        %v271 = vld [vmem:[%s228 + $0x10c] sm:$0xff]
        %v272 = vld [vmem:[%s228 + $0x114] sm:$0xf]
        %v273 = vld [vmem:[%s228 + $0x118] sm:$0xff]
        %v274 = vld [vmem:[%s228 + $0x120] sm:$0xff]
        %v275 = vld [vmem:[%s228 + $0x128] sm:$0xf]
        %v276 = vld [vmem:[%s228 + $0x12c] sm:$0xff]
        %v277 = vld [vmem:[%s228 + $0x134] sm:$0xff]
        %v278 = vld [vmem:[%s228 + $0x13c] sm:$0xf]
        %v279 = vld [vmem:[%s1] sm:$0xff]
        %v280 = vld [vmem:[%s1 + $0x8] sm:$0xff]
        %v281 = vld [vmem:[%s1 + $0x10] sm:$0xff]
        %v282 = vld [vmem:[%s1 + $0x18] sm:$0xff]
        %v283 = vld [vmem:[%s1 + $0x20] sm:$0xff]
        %v284 = vld [vmem:[%s1 + $0x28] sm:$0xff]
        %v285 = vld [vmem:[%s1 + $0x30] sm:$0xff]
        %v286 = vld [vmem:[%s1 + $0x38] sm:$0xff]
        %v287 = vld [vmem:[%s1 + $0x40] sm:$0xff]
        %v288 = vld [vmem:[%s1 + $0x48] sm:$0xff]
        %v289 = vld [vmem:[%s1 + $0x50] sm:$0xff]
        %v290 = vld [vmem:[%s1 + $0x58] sm:$0xff]
        %v291 = vld [vmem:[%s1 + $0x60] sm:$0xff]
        %v292 = vld [vmem:[%s1 + $0x68] sm:$0xff]
        %v293 = vld [vmem:[%s1 + $0x70] sm:$0xff]
        %v294 = vld [vmem:[%s1 + $0x78] sm:$0xff]
        %v295 = vld [vmem:[%s1 + $0x80] sm:$0xff]
        %v296 = vld [vmem:[%s1 + $0x88] sm:$0xff]
        %v297 = vld [vmem:[%s1 + $0x90] sm:$0xff]
        %v298 = vld [vmem:[%s1 + $0x98] sm:$0xff]
        %v299 = vld [vmem:[%s1 + $0xa0] sm:$0xff]
        %v300 = vld [vmem:[%s1 + $0xa8] sm:$0xff]
        %v301 = vld [vmem:[%s1 + $0xb0] sm:$0xff]
        %v302 = vld [vmem:[%s1 + $0xb8] sm:$0xff]
        %v303 = vld [vmem:[%s1 + $0xc0] sm:$0xff]
        %v304 = vld [vmem:[%s1 + $0xc8] sm:$0xff]
        %v305 = vld [vmem:[%s1 + $0xd0] sm:$0xff]
        %v306 = vld [vmem:[%s1 + $0xd8] sm:$0xff]
        %v307 = vld [vmem:[%s1 + $0xe0] sm:$0xff]
        %v308 = vld [vmem:[%s1 + $0xe8] sm:$0xff]
        %v309 = vld [vmem:[%s1 + $0xf0] sm:$0xff]
        %v310 = vld [vmem:[%s1 + $0xf8] sm:$0xff]
        %v311 = vld [vmem:[%s1 + $0x100] sm:$0xff]
        %v312 = vld [vmem:[%s1 + $0x108] sm:$0xff]
        %v313 = vld [vmem:[%s1 + $0x110] sm:$0xff]
        %v314 = vld [vmem:[%s1 + $0x118] sm:$0xff]
        %v315 = vld [vmem:[%s1 + $0x120] sm:$0xff]
        %v316 = vld [vmem:[%s1 + $0x128] sm:$0xff]
        %v317 = vld [vmem:[%s1 + $0x130] sm:$0xff]
        %v318 = vld [vmem:[%s1 + $0x138] sm:$0xff]
        %v319 = vld [vmem:[%s1 + $0x140] sm:$0xff]
        %v320 = vld [vmem:[%s1 + $0x148] sm:$0xff]
        %v321 = vld [vmem:[%s1 + $0x150] sm:$0xff]
        %v322 = vld [vmem:[%s1 + $0x158] sm:$0xff]
        %v323 = vld [vmem:[%s1 + $0x160] sm:$0xff]
        %v324 = vld [vmem:[%s1 + $0x168] sm:$0xff]
        %v325 = vld [vmem:[%s1 + $0x170] sm:$0xff]
        %v326 = vld [vmem:[%s1 + $0x178] sm:$0xff]
        %v327 = vld [vmem:[%s1 + $0x180] sm:$0xff]
        %v328 = vld [vmem:[%s1 + $0x188] sm:$0xff]
        %v329 = vld [vmem:[%s1 + $0x190] sm:$0xff]
        %v330 = vld [vmem:[%s1 + $0x198] sm:$0xff]
        %v331 = vld [vmem:[%s1 + $0x1a0] sm:$0xff]
        %v332 = vld [vmem:[%s1 + $0x1a8] sm:$0xff]
        %v333 = vld [vmem:[%s1 + $0x1b0] sm:$0xff]
        %v334 = vld [vmem:[%s1 + $0x1b8] sm:$0xff]
        %v335 = vld [vmem:[%s1 + $0x1c0] sm:$0xff]
        %v336 = vld [vmem:[%s1 + $0x1c8] sm:$0xff]
        %v337 = vld [vmem:[%s1 + $0x1d0] sm:$0xff]
        %v338 = vld [vmem:[%s1 + $0x1d8] sm:$0xff]
        %v339 = vld [vmem:[%s1 + $0x1e0] sm:$0xff]
        %v340 = vld [vmem:[%s1 + $0x1e8] sm:$0xff]
        %v341 = vld [vmem:[%s1 + $0x1f0] sm:$0xff]
        %v342 = vld [vmem:[%s1 + $0x1f8] sm:$0xff]
        %v343 = vld [vmem:[%s1 + $0x200] sm:$0xff]
        %v344 = vld [vmem:[%s1 + $0x208] sm:$0xff]
        %v345 = vld [vmem:[%s1 + $0x210] sm:$0xff]
        %v346 = vld [vmem:[%s1 + $0x218] sm:$0xff]
        %v347 = vld [vmem:[%s1 + $0x220] sm:$0xff]
        %v348 = vld [vmem:[%s1 + $0x228] sm:$0xff]
        %v349 = vld [vmem:[%s1 + $0x230] sm:$0xff]
        %v350 = vld [vmem:[%s1 + $0x238] sm:$0xff]
        %v351 = vld [vmem:[%s1 + $0x240] sm:$0xff]
        %v352 = vld [vmem:[%s1 + $0x248] sm:$0xff]
        %v353 = vld [vmem:[%s1 + $0x250] sm:$0xff]
        %v354 = vld [vmem:[%s1 + $0x258] sm:$0xff]
        %v355 = vld [vmem:[%s1 + $0x260] sm:$0xff]
        %v356 = vld [vmem:[%s1 + $0x268] sm:$0xff]
        %v357 = vld [vmem:[%s1 + $0x270] sm:$0xff]
        %v358 = vld [vmem:[%s1 + $0x278] sm:$0xff]
        %v359 = vld [vmem:[%s1 + $0x280] sm:$0xff]
        %v360 = vld [vmem:[%s1 + $0x288] sm:$0xff]
        %v361 = vld [vmem:[%s1 + $0x290] sm:$0xff]
        %v362 = vld [vmem:[%s1 + $0x298] sm:$0xff]
        %v363 = vld [vmem:[%s1 + $0x2a0] sm:$0xff]
        %v364 = vld [vmem:[%s1 + $0x2a8] sm:$0xff]
        %v365 = vld [vmem:[%s1 + $0x2b0] sm:$0xff]
        %v366 = vld [vmem:[%s1 + $0x2b8] sm:$0xff]
        %v367 = vld [vmem:[%s1 + $0x2c0] sm:$0xff]
        %v368 = vld [vmem:[%s1 + $0x2c8] sm:$0xff]
        %v369 = vld [vmem:[%s1 + $0x2d0] sm:$0xff]
        %v370 = vld [vmem:[%s1 + $0x2d8] sm:$0xff]
        %v371 = vld [vmem:[%s1 + $0x2e0] sm:$0xff]
        %v372 = vld [vmem:[%s1 + $0x2e8] sm:$0xff]
        %v373 = vld [vmem:[%s1 + $0x2f0] sm:$0xff]
        %v374 = vld [vmem:[%s1 + $0x2f8] sm:$0xff]
        %v375 = vld [vmem:[%s1 + $0x300] sm:$0xff]
        %v376 = vld [vmem:[%s1 + $0x308] sm:$0xff]
        %v377 = vld [vmem:[%s1 + $0x310] sm:$0xff]
        %v378 = vld [vmem:[%s1 + $0x318] sm:$0xff]
        %v379 = vld [vmem:[%s1 + $0x320] sm:$0xff]
        %v380 = vld [vmem:[%s1 + $0x328] sm:$0xff]
        %v381 = vld [vmem:[%s1 + $0x330] sm:$0xff]
        %v382 = vld [vmem:[%s1 + $0x338] sm:$0xff]
        %v383 = vld [vmem:[%s1 + $0x340] sm:$0xff]
        %v384 = vld [vmem:[%s1 + $0x348] sm:$0xff]
        %v385 = vld [vmem:[%s1 + $0x350] sm:$0xff]
        %v386 = vld [vmem:[%s1 + $0x358] sm:$0xff]
        %v387 = vld [vmem:[%s1 + $0x360] sm:$0xff]
        %v388 = vld [vmem:[%s1 + $0x368] sm:$0xff]
        %v389 = vld [vmem:[%s1 + $0x370] sm:$0xff]
        %v390 = vld [vmem:[%s1 + $0x378] sm:$0xff]
        %v391 = vld [vmem:[%s1 + $0x380] sm:$0xff]
        %v392 = vld [vmem:[%s1 + $0x388] sm:$0xff]
        %v393 = vld [vmem:[%s1 + $0x390] sm:$0xff]
        %v394 = vld [vmem:[%s1 + $0x398] sm:$0xff]
        %v395 = vld [vmem:[%s1 + $0x3a0] sm:$0xff]
        %v396 = vld [vmem:[%s1 + $0x3a8] sm:$0xff]
        %v397 = vld [vmem:[%s1 + $0x3b0] sm:$0xff]
        %v398 = vld [vmem:[%s1 + $0x3b8] sm:$0xff]
        %v399 = vld [vmem:[%s1 + $0x3c0] sm:$0xff]
        %v400 = vld [vmem:[%s1 + $0x3c8] sm:$0xff]
        %v401 = vld [vmem:[%s1 + $0x3d0] sm:$0xff]
        %v402 = vld [vmem:[%s1 + $0x3d8] sm:$0xff]
        %v403 = vld [vmem:[%s1 + $0x3e0] sm:$0xff]
        %v404 = vld [vmem:[%s1 + $0x3e8] sm:$0xff]
        %v405 = vld [vmem:[%s1 + $0x3f0] sm:$0xff]
        %v406 = vld [vmem:[%s1 + $0x3f8] sm:$0xff]
        %v407 = vld [vmem:[%s1 + $0x400] sm:$0xff]
        %v408 = vld [vmem:[%s1 + $0x408] sm:$0xff]
        %v409 = vld [vmem:[%s1 + $0x410] sm:$0xff]
        %v410 = vld [vmem:[%s1 + $0x418] sm:$0xff]
        %v411 = vld [vmem:[%s2] sm:$0xf]
        %v413 = vlaneseq
        %v414 = vshrl.u32 %v413, 7
        %v415 = vsub.s32 0, %v414
        %v416 = vrot.slane %v411, %v415
        %v417 = vlaneseq
        %v418 = vshrl.u32 %v417, 7
        %v419 = vsub.s32 1, %v418
        %v420 = vrot.slane %v411, %v419
        %v421 = vlaneseq
        %v422 = vshrl.u32 %v421, 7
        %v423 = vsub.s32 2, %v422
        %v424 = vrot.slane %v411, %v423
        %v425 = vlaneseq
        %v426 = vshrl.u32 %v425, 7
        %v427 = vsub.s32 3, %v426
        %v428 = vrot.slane %v411, %v427
        %v481 = vunpack.c.l.b16 %v231
        %v482 = vunpack.c.h.b16 %v231
        %v483 = vunpack.c.l.b16 %v232
        %v484 = vunpack.c.h.b16 %v232
        %v485 = vunpack.c.l.b16 %v233
        %v486 = vunpack.c.l.b16 %v234
        %v487 = vunpack.c.h.b16 %v234
        %v488 = vunpack.c.l.b16 %v235
        %v489 = vunpack.c.h.b16 %v235
        %v490 = vunpack.c.l.b16 %v236
        %v491 = vunpack.c.l.b16 %v237
        %v492 = vunpack.c.h.b16 %v237
        %v493 = vunpack.c.l.b16 %v238
        %v494 = vunpack.c.h.b16 %v238
        %v495 = vunpack.c.l.b16 %v239
        %v496 = vunpack.c.l.b16 %v240
        %v497 = vunpack.c.h.b16 %v240
        %v498 = vunpack.c.l.b16 %v241
        %v499 = vunpack.c.h.b16 %v241
        %v500 = vunpack.c.l.b16 %v242
        %v501 = vunpack.c.l.b16 %v243
        %v502 = vunpack.c.h.b16 %v243
        %v503 = vunpack.c.l.b16 %v244
        %v504 = vunpack.c.h.b16 %v244
        %v505 = vunpack.c.l.b16 %v245
        %v506 = vunpack.c.l.b16 %v246
        %v507 = vunpack.c.h.b16 %v246
        %v508 = vunpack.c.l.b16 %v247
        %v509 = vunpack.c.h.b16 %v247
        %v510 = vunpack.c.l.b16 %v248
        %v511 = vunpack.c.l.b16 %v249
        %v512 = vunpack.c.h.b16 %v249
        %v513 = vunpack.c.l.b16 %v250
        %v514 = vunpack.c.h.b16 %v250
        %v515 = vunpack.c.l.b16 %v251
        %v516 = vunpack.c.l.b16 %v252
        %v517 = vunpack.c.h.b16 %v252
        %v518 = vunpack.c.l.b16 %v253
        %v519 = vunpack.c.h.b16 %v253
        %v520 = vunpack.c.l.b16 %v254
        %v521 = vunpack.c.l.b16 %v255
        %v522 = vunpack.c.h.b16 %v255
        %v523 = vunpack.c.l.b16 %v256
        %v524 = vunpack.c.h.b16 %v256
        %v525 = vunpack.c.l.b16 %v257
        %v526 = vunpack.c.l.b16 %v258
        %v527 = vunpack.c.h.b16 %v258
        %v528 = vunpack.c.l.b16 %v259
        %v529 = vunpack.c.h.b16 %v259
        %v530 = vunpack.c.l.b16 %v260
        %v531 = vunpack.c.l.b16 %v261
        %v532 = vunpack.c.h.b16 %v261
        %v533 = vunpack.c.l.b16 %v262
        %v534 = vunpack.c.h.b16 %v262
        %v535 = vunpack.c.l.b16 %v263
        %v536 = vunpack.c.l.b16 %v264
        %v537 = vunpack.c.h.b16 %v264
        %v538 = vunpack.c.l.b16 %v265
        %v539 = vunpack.c.h.b16 %v265
        %v540 = vunpack.c.l.b16 %v266
        %v541 = vunpack.c.l.b16 %v267
        %v542 = vunpack.c.h.b16 %v267
        %v543 = vunpack.c.l.b16 %v268
        %v544 = vunpack.c.h.b16 %v268
        %v545 = vunpack.c.l.b16 %v269
        %v546 = vunpack.c.l.b16 %v270
        %v547 = vunpack.c.h.b16 %v270
        %v548 = vunpack.c.l.b16 %v271
        %v549 = vunpack.c.h.b16 %v271
        %v550 = vunpack.c.l.b16 %v272
        %v551 = vunpack.c.l.b16 %v273
        %v552 = vunpack.c.h.b16 %v273
        %v553 = vunpack.c.l.b16 %v274
        %v554 = vunpack.c.h.b16 %v274
        %v555 = vunpack.c.l.b16 %v275
        %v556 = vunpack.c.l.b16 %v276
        %v557 = vunpack.c.h.b16 %v276
        %v558 = vunpack.c.l.b16 %v277
        %v559 = vunpack.c.h.b16 %v277
        %v560 = vunpack.c.l.b16 %v278
        %v561 = vpack.c.b16 %v486, %v481
        %v562 = vpack.c.b16 %v487, %v482
        %v563 = vpack.c.b16 %v488, %v483
        %v564 = vpack.c.b16 %v489, %v484
        %v565 = vpack.c.b16 %v490, %v485
        %v566 = vpack.c.b16 %v496, %v491
        %v567 = vpack.c.b16 %v497, %v492
        %v568 = vpack.c.b16 %v498, %v493
        %v569 = vpack.c.b16 %v499, %v494
        %v570 = vpack.c.b16 %v500, %v495
        %v571 = vpack.c.b16 %v506, %v501
        %v572 = vpack.c.b16 %v507, %v502
        %v573 = vpack.c.b16 %v508, %v503
        %v574 = vpack.c.b16 %v509, %v504
        %v575 = vpack.c.b16 %v510, %v505
        %v576 = vpack.c.b16 %v516, %v511
        %v577 = vpack.c.b16 %v517, %v512
        %v578 = vpack.c.b16 %v518, %v513
        %v579 = vpack.c.b16 %v519, %v514
        %v580 = vpack.c.b16 %v520, %v515
        %v581 = vpack.c.b16 %v526, %v521
        %v582 = vpack.c.b16 %v527, %v522
        %v583 = vpack.c.b16 %v528, %v523
        %v584 = vpack.c.b16 %v529, %v524
        %v585 = vpack.c.b16 %v530, %v525
        %v586 = vpack.c.b16 %v536, %v531
        %v587 = vpack.c.b16 %v537, %v532
        %v588 = vpack.c.b16 %v538, %v533
        %v589 = vpack.c.b16 %v539, %v534
        %v590 = vpack.c.b16 %v540, %v535
        %v591 = vpack.c.b16 %v546, %v541
        %v592 = vpack.c.b16 %v547, %v542
        %v593 = vpack.c.b16 %v548, %v543
        %v594 = vpack.c.b16 %v549, %v544
        %v595 = vpack.c.b16 %v550, %v545
        %v596 = vpack.c.b16 %v556, %v551
        %v597 = vpack.c.b16 %v557, %v552
        %v598 = vpack.c.b16 %v558, %v553
        %v599 = vpack.c.b16 %v559, %v554
        %v600 = vpack.c.b16 %v560, %v555
        %v765 = vunpack.c.l.b16 %v279
        %v766 = vunpack.c.h.b16 %v279
        %v767 = vunpack.c.l.b16 %v280
        %v768 = vunpack.c.h.b16 %v280
        %v769 = vunpack.c.l.b16 %v281
        %v770 = vunpack.c.h.b16 %v281
        %v771 = vunpack.c.l.b16 %v282
        %v772 = vunpack.c.h.b16 %v282
        %v773 = vunpack.c.l.b16 %v283
        %v774 = vunpack.c.h.b16 %v283
        %v775 = vunpack.c.l.b16 %v284
        %v776 = vunpack.c.h.b16 %v284
        %v777 = vunpack.c.l.b16 %v285
        %v778 = vunpack.c.h.b16 %v285
        %v779 = vunpack.c.l.b16 %v286
        %v780 = vunpack.c.h.b16 %v286
        %v781 = vunpack.c.l.b16 %v287
        %v782 = vunpack.c.h.b16 %v287
        %v783 = vunpack.c.l.b16 %v288
        %v784 = vunpack.c.h.b16 %v288
        %v785 = vunpack.c.l.b16 %v289
        %v786 = vunpack.c.h.b16 %v289
        %v787 = vunpack.c.l.b16 %v290
        %v788 = vunpack.c.h.b16 %v290
        %v789 = vunpack.c.l.b16 %v291
        %v790 = vunpack.c.h.b16 %v291
        %v791 = vunpack.c.l.b16 %v292
        %v792 = vunpack.c.h.b16 %v292
        %v793 = vunpack.c.l.b16 %v293
        %v794 = vunpack.c.h.b16 %v293
        %v795 = vunpack.c.l.b16 %v294
        %v796 = vunpack.c.h.b16 %v294
        %v797 = vunpack.c.l.b16 %v295
        %v798 = vunpack.c.h.b16 %v295
        %v799 = vunpack.c.l.b16 %v296
        %v800 = vunpack.c.h.b16 %v296
        %v801 = vunpack.c.l.b16 %v297
        %v802 = vunpack.c.h.b16 %v297
        %v803 = vunpack.c.l.b16 %v298
        %v804 = vunpack.c.h.b16 %v298
        %v805 = vunpack.c.l.b16 %v299
        %v806 = vunpack.c.h.b16 %v299
        %v807 = vunpack.c.l.b16 %v300
        %v808 = vunpack.c.h.b16 %v300
        %v809 = vunpack.c.l.b16 %v301
        %v810 = vunpack.c.h.b16 %v301
        %v811 = vunpack.c.l.b16 %v302
        %v812 = vunpack.c.h.b16 %v302
        %v813 = vunpack.c.l.b16 %v303
        %v814 = vunpack.c.h.b16 %v303
        %v815 = vunpack.c.l.b16 %v304
        %v816 = vunpack.c.h.b16 %v304
        %v817 = vunpack.c.l.b16 %v305
        %v818 = vunpack.c.h.b16 %v305
        %v819 = vunpack.c.l.b16 %v306
        %v820 = vunpack.c.h.b16 %v306
        %v821 = vunpack.c.l.b16 %v307
        %v822 = vunpack.c.h.b16 %v307
        %v823 = vunpack.c.l.b16 %v308
        %v824 = vunpack.c.h.b16 %v308
        %v825 = vunpack.c.l.b16 %v309
        %v826 = vunpack.c.h.b16 %v309
        %v827 = vunpack.c.l.b16 %v310
        %v828 = vunpack.c.h.b16 %v310
        %v829 = vunpack.c.l.b16 %v311
        %v830 = vunpack.c.h.b16 %v311
        %v831 = vunpack.c.l.b16 %v312
        %v832 = vunpack.c.h.b16 %v312
        %v833 = vunpack.c.l.b16 %v313
        %v834 = vunpack.c.h.b16 %v313
        %v835 = vunpack.c.l.b16 %v314
        %v836 = vunpack.c.h.b16 %v314
        %v837 = vunpack.c.l.b16 %v315
        %v838 = vunpack.c.h.b16 %v315
        %v839 = vunpack.c.l.b16 %v316
        %v840 = vunpack.c.h.b16 %v316
        %v841 = vunpack.c.l.b16 %v317
        %v842 = vunpack.c.h.b16 %v317
        %v843 = vunpack.c.l.b16 %v318
        %v844 = vunpack.c.h.b16 %v318
        %v845 = vunpack.c.l.b16 %v319
        %v846 = vunpack.c.h.b16 %v319
        %v847 = vunpack.c.l.b16 %v320
        %v848 = vunpack.c.h.b16 %v320
        %v849 = vunpack.c.l.b16 %v321
        %v850 = vunpack.c.h.b16 %v321
        %v851 = vunpack.c.l.b16 %v322
        %v852 = vunpack.c.h.b16 %v322
        %v853 = vunpack.c.l.b16 %v323
        %v854 = vunpack.c.h.b16 %v323
        %v855 = vunpack.c.l.b16 %v324
        %v856 = vunpack.c.h.b16 %v324
        %v857 = vunpack.c.l.b16 %v325
        %v858 = vunpack.c.h.b16 %v325
        %v859 = vunpack.c.l.b16 %v326
        %v860 = vunpack.c.h.b16 %v326
        %v861 = vunpack.c.l.b16 %v327
        %v862 = vunpack.c.h.b16 %v327
        %v863 = vunpack.c.l.b16 %v328
        %v864 = vunpack.c.h.b16 %v328
        %v865 = vunpack.c.l.b16 %v329
        %v866 = vunpack.c.h.b16 %v329
        %v867 = vunpack.c.l.b16 %v330
        %v868 = vunpack.c.h.b16 %v330
        %v869 = vunpack.c.l.b16 %v331
        %v870 = vunpack.c.h.b16 %v331
        %v871 = vunpack.c.l.b16 %v332
        %v872 = vunpack.c.h.b16 %v332
        %v873 = vunpack.c.l.b16 %v333
        %v874 = vunpack.c.h.b16 %v333
        %v875 = vunpack.c.l.b16 %v334
        %v876 = vunpack.c.h.b16 %v334
        %v877 = vunpack.c.l.b16 %v335
        %v878 = vunpack.c.h.b16 %v335
        %v879 = vunpack.c.l.b16 %v336
        %v880 = vunpack.c.h.b16 %v336
        %v881 = vunpack.c.l.b16 %v337
        %v882 = vunpack.c.h.b16 %v337
        %v883 = vunpack.c.l.b16 %v338
        %v884 = vunpack.c.h.b16 %v338
        %v885 = vunpack.c.l.b16 %v339
        %v886 = vunpack.c.h.b16 %v339
        %v887 = vunpack.c.l.b16 %v340
        %v888 = vunpack.c.h.b16 %v340
        %v889 = vunpack.c.l.b16 %v341
        %v890 = vunpack.c.h.b16 %v341
        %v891 = vunpack.c.l.b16 %v342
        %v892 = vunpack.c.h.b16 %v342
        %v893 = vunpack.c.l.b16 %v343
        %v894 = vunpack.c.h.b16 %v343
        %v895 = vunpack.c.l.b16 %v344
        %v896 = vunpack.c.h.b16 %v344
        %v897 = vunpack.c.l.b16 %v345
        %v898 = vunpack.c.h.b16 %v345
        %v899 = vunpack.c.l.b16 %v346
        %v900 = vunpack.c.h.b16 %v346
        %v901 = vunpack.c.l.b16 %v347
        %v902 = vunpack.c.h.b16 %v347
        %v903 = vunpack.c.l.b16 %v348
        %v904 = vunpack.c.h.b16 %v348
        %v905 = vunpack.c.l.b16 %v349
        %v906 = vunpack.c.h.b16 %v349
        %v907 = vunpack.c.l.b16 %v350
        %v908 = vunpack.c.h.b16 %v350
        %v909 = vunpack.c.l.b16 %v351
        %v910 = vunpack.c.h.b16 %v351
        %v911 = vunpack.c.l.b16 %v352
        %v912 = vunpack.c.h.b16 %v352
        %v913 = vunpack.c.l.b16 %v353
        %v914 = vunpack.c.h.b16 %v353
        %v915 = vunpack.c.l.b16 %v354
        %v916 = vunpack.c.h.b16 %v354
        %v917 = vunpack.c.l.b16 %v355
        %v918 = vunpack.c.h.b16 %v355
        %v919 = vunpack.c.l.b16 %v356
        %v920 = vunpack.c.h.b16 %v356
        %v921 = vunpack.c.l.b16 %v357
        %v922 = vunpack.c.h.b16 %v357
        %v923 = vunpack.c.l.b16 %v358
        %v924 = vunpack.c.h.b16 %v358
        %v925 = vunpack.c.l.b16 %v359
        %v926 = vunpack.c.h.b16 %v359
        %v927 = vunpack.c.l.b16 %v360
        %v928 = vunpack.c.h.b16 %v360
        %v929 = vunpack.c.l.b16 %v361
        %v930 = vunpack.c.h.b16 %v361
        %v931 = vunpack.c.l.b16 %v362
        %v932 = vunpack.c.h.b16 %v362
        %v933 = vunpack.c.l.b16 %v363
        %v934 = vunpack.c.h.b16 %v363
        %v935 = vunpack.c.l.b16 %v364
        %v936 = vunpack.c.h.b16 %v364
        %v937 = vunpack.c.l.b16 %v365
        %v938 = vunpack.c.h.b16 %v365
        %v939 = vunpack.c.l.b16 %v366
        %v940 = vunpack.c.h.b16 %v366
        %v941 = vunpack.c.l.b16 %v367
        %v942 = vunpack.c.h.b16 %v367
        %v943 = vunpack.c.l.b16 %v368
        %v944 = vunpack.c.h.b16 %v368
        %v945 = vunpack.c.l.b16 %v369
        %v946 = vunpack.c.h.b16 %v369
        %v947 = vunpack.c.l.b16 %v370
        %v948 = vunpack.c.h.b16 %v370
        %v949 = vunpack.c.l.b16 %v371
        %v950 = vunpack.c.h.b16 %v371
        %v951 = vunpack.c.l.b16 %v372
        %v952 = vunpack.c.h.b16 %v372
        %v953 = vunpack.c.l.b16 %v373
        %v954 = vunpack.c.h.b16 %v373
        %v955 = vunpack.c.l.b16 %v374
        %v956 = vunpack.c.h.b16 %v374
        %v957 = vunpack.c.l.b16 %v375
        %v958 = vunpack.c.h.b16 %v375
        %v959 = vunpack.c.l.b16 %v376
        %v960 = vunpack.c.h.b16 %v376
        %v961 = vunpack.c.l.b16 %v377
        %v962 = vunpack.c.h.b16 %v377
        %v963 = vunpack.c.l.b16 %v378
        %v964 = vunpack.c.h.b16 %v378
        %v965 = vunpack.c.l.b16 %v379
        %v966 = vunpack.c.h.b16 %v379
        %v967 = vunpack.c.l.b16 %v380
        %v968 = vunpack.c.h.b16 %v380
        %v969 = vunpack.c.l.b16 %v381
        %v970 = vunpack.c.h.b16 %v381
        %v971 = vunpack.c.l.b16 %v382
        %v972 = vunpack.c.h.b16 %v382
        %v973 = vunpack.c.l.b16 %v383
        %v974 = vunpack.c.h.b16 %v383
        %v975 = vunpack.c.l.b16 %v384
        %v976 = vunpack.c.h.b16 %v384
        %v977 = vunpack.c.l.b16 %v385
        %v978 = vunpack.c.h.b16 %v385
        %v979 = vunpack.c.l.b16 %v386
        %v980 = vunpack.c.h.b16 %v386
        %v981 = vunpack.c.l.b16 %v387
        %v982 = vunpack.c.h.b16 %v387
        %v983 = vunpack.c.l.b16 %v388
        %v984 = vunpack.c.h.b16 %v388
        %v985 = vunpack.c.l.b16 %v389
        %v986 = vunpack.c.h.b16 %v389
        %v987 = vunpack.c.l.b16 %v390
        %v988 = vunpack.c.h.b16 %v390
        %v989 = vunpack.c.l.b16 %v391
        %v990 = vunpack.c.h.b16 %v391
        %v991 = vunpack.c.l.b16 %v392
        %v992 = vunpack.c.h.b16 %v392
        %v993 = vunpack.c.l.b16 %v393
        %v994 = vunpack.c.h.b16 %v393
        %v995 = vunpack.c.l.b16 %v394
        %v996 = vunpack.c.h.b16 %v394
        %v997 = vunpack.c.l.b16 %v395
        %v998 = vunpack.c.h.b16 %v395
        %v999 = vunpack.c.l.b16 %v396
        %v1000 = vunpack.c.h.b16 %v396
        %v1001 = vunpack.c.l.b16 %v397
        %v1002 = vunpack.c.h.b16 %v397
        %v1003 = vunpack.c.l.b16 %v398
        %v1004 = vunpack.c.h.b16 %v398
        %v1005 = vunpack.c.l.b16 %v399
        %v1006 = vunpack.c.h.b16 %v399
        %v1007 = vunpack.c.l.b16 %v400
        %v1008 = vunpack.c.h.b16 %v400
        %v1009 = vunpack.c.l.b16 %v401
        %v1010 = vunpack.c.h.b16 %v401
        %v1011 = vunpack.c.l.b16 %v402
        %v1012 = vunpack.c.h.b16 %v402
        %v1013 = vunpack.c.l.b16 %v403
        %v1014 = vunpack.c.h.b16 %v403
        %v1015 = vunpack.c.l.b16 %v404
        %v1016 = vunpack.c.h.b16 %v404
        %v1017 = vunpack.c.l.b16 %v405
        %v1018 = vunpack.c.h.b16 %v405
        %v1019 = vunpack.c.l.b16 %v406
        %v1020 = vunpack.c.h.b16 %v406
        %v1021 = vunpack.c.l.b16 %v407
        %v1022 = vunpack.c.h.b16 %v407
        %v1023 = vunpack.c.l.b16 %v408
        %v1024 = vunpack.c.h.b16 %v408
        %v1025 = vunpack.c.l.b16 %v409
        %v1026 = vunpack.c.h.b16 %v409
        %v1027 = vunpack.c.l.b16 %v410
        %v1028 = vunpack.c.h.b16 %v410
        %v1029 = vpack.c.b16 %v769, %v765
        %v1030 = vpack.c.b16 %v770, %v766
        %v1031 = vpack.c.b16 %v771, %v767
        %v1032 = vpack.c.b16 %v772, %v768
        %v1033 = vpack.c.b16 %v777, %v773
        %v1034 = vpack.c.b16 %v778, %v774
        %v1035 = vpack.c.b16 %v779, %v775
        %v1036 = vpack.c.b16 %v780, %v776
        %v1037 = vpack.c.b16 %v785, %v781
        %v1038 = vpack.c.b16 %v786, %v782
        %v1039 = vpack.c.b16 %v787, %v783
        %v1040 = vpack.c.b16 %v788, %v784
        %v1041 = vpack.c.b16 %v793, %v789
        %v1042 = vpack.c.b16 %v794, %v790
        %v1043 = vpack.c.b16 %v795, %v791
        %v1044 = vpack.c.b16 %v796, %v792
        %v1045 = vpack.c.b16 %v801, %v797
        %v1046 = vpack.c.b16 %v802, %v798
        %v1047 = vpack.c.b16 %v803, %v799
        %v1048 = vpack.c.b16 %v804, %v800
        %v1049 = vpack.c.b16 %v809, %v805
        %v1050 = vpack.c.b16 %v810, %v806
        %v1051 = vpack.c.b16 %v811, %v807
        %v1052 = vpack.c.b16 %v812, %v808
        %v1053 = vpack.c.b16 %v817, %v813
        %v1054 = vpack.c.b16 %v818, %v814
        %v1055 = vpack.c.b16 %v819, %v815
        %v1056 = vpack.c.b16 %v820, %v816
        %v1057 = vpack.c.b16 %v825, %v821
        %v1058 = vpack.c.b16 %v826, %v822
        %v1059 = vpack.c.b16 %v827, %v823
        %v1060 = vpack.c.b16 %v828, %v824
        %v1061 = vpack.c.b16 %v833, %v829
        %v1062 = vpack.c.b16 %v834, %v830
        %v1063 = vpack.c.b16 %v835, %v831
        %v1064 = vpack.c.b16 %v836, %v832
        %v1065 = vpack.c.b16 %v841, %v837
        %v1066 = vpack.c.b16 %v842, %v838
        %v1067 = vpack.c.b16 %v843, %v839
        %v1068 = vpack.c.b16 %v844, %v840
        %v1069 = vpack.c.b16 %v849, %v845
        %v1070 = vpack.c.b16 %v850, %v846
        %v1071 = vpack.c.b16 %v851, %v847
        %v1072 = vpack.c.b16 %v852, %v848
        %v1073 = vpack.c.b16 %v857, %v853
        %v1074 = vpack.c.b16 %v858, %v854
        %v1075 = vpack.c.b16 %v859, %v855
        %v1076 = vpack.c.b16 %v860, %v856
        %v1077 = vpack.c.b16 %v865, %v861
        %v1078 = vpack.c.b16 %v866, %v862
        %v1079 = vpack.c.b16 %v867, %v863
        %v1080 = vpack.c.b16 %v868, %v864
        %v1081 = vpack.c.b16 %v873, %v869
        %v1082 = vpack.c.b16 %v874, %v870
        %v1083 = vpack.c.b16 %v875, %v871
        %v1084 = vpack.c.b16 %v876, %v872
        %v1085 = vpack.c.b16 %v881, %v877
        %v1086 = vpack.c.b16 %v882, %v878
        %v1087 = vpack.c.b16 %v883, %v879
        %v1088 = vpack.c.b16 %v884, %v880
        %v1089 = vpack.c.b16 %v889, %v885
        %v1090 = vpack.c.b16 %v890, %v886
        %v1091 = vpack.c.b16 %v891, %v887
        %v1092 = vpack.c.b16 %v892, %v888
        %v1093 = vpack.c.b16 %v897, %v893
        %v1094 = vpack.c.b16 %v898, %v894
        %v1095 = vpack.c.b16 %v899, %v895
        %v1096 = vpack.c.b16 %v900, %v896
        %v1097 = vpack.c.b16 %v905, %v901
        %v1098 = vpack.c.b16 %v906, %v902
        %v1099 = vpack.c.b16 %v907, %v903
        %v1100 = vpack.c.b16 %v908, %v904
        %v1101 = vpack.c.b16 %v913, %v909
        %v1102 = vpack.c.b16 %v914, %v910
        %v1103 = vpack.c.b16 %v915, %v911
        %v1104 = vpack.c.b16 %v916, %v912
        %v1105 = vpack.c.b16 %v921, %v917
        %v1106 = vpack.c.b16 %v922, %v918
        %v1107 = vpack.c.b16 %v923, %v919
        %v1108 = vpack.c.b16 %v924, %v920
        %v1109 = vpack.c.b16 %v929, %v925
        %v1110 = vpack.c.b16 %v930, %v926
        %v1111 = vpack.c.b16 %v931, %v927
        %v1112 = vpack.c.b16 %v932, %v928
        %v1113 = vpack.c.b16 %v937, %v933
        %v1114 = vpack.c.b16 %v938, %v934
        %v1115 = vpack.c.b16 %v939, %v935
        %v1116 = vpack.c.b16 %v940, %v936
        %v1117 = vpack.c.b16 %v945, %v941
        %v1118 = vpack.c.b16 %v946, %v942
        %v1119 = vpack.c.b16 %v947, %v943
        %v1120 = vpack.c.b16 %v948, %v944
        %v1121 = vpack.c.b16 %v953, %v949
        %v1122 = vpack.c.b16 %v954, %v950
        %v1123 = vpack.c.b16 %v955, %v951
        %v1124 = vpack.c.b16 %v956, %v952
        %v1125 = vpack.c.b16 %v961, %v957
        %v1126 = vpack.c.b16 %v962, %v958
        %v1127 = vpack.c.b16 %v963, %v959
        %v1128 = vpack.c.b16 %v964, %v960
        %v1129 = vpack.c.b16 %v969, %v965
        %v1130 = vpack.c.b16 %v970, %v966
        %v1131 = vpack.c.b16 %v971, %v967
        %v1132 = vpack.c.b16 %v972, %v968
        %v1133 = vpack.c.b16 %v977, %v973
        %v1134 = vpack.c.b16 %v978, %v974
        %v1135 = vpack.c.b16 %v979, %v975
        %v1136 = vpack.c.b16 %v980, %v976
        %v1137 = vpack.c.b16 %v985, %v981
        %v1138 = vpack.c.b16 %v986, %v982
        %v1139 = vpack.c.b16 %v987, %v983
        %v1140 = vpack.c.b16 %v988, %v984
        %v1141 = vpack.c.b16 %v993, %v989
        %v1142 = vpack.c.b16 %v994, %v990
        %v1143 = vpack.c.b16 %v995, %v991
        %v1144 = vpack.c.b16 %v996, %v992
        %v1145 = vpack.c.b16 %v1001, %v997
        %v1146 = vpack.c.b16 %v1002, %v998
        %v1147 = vpack.c.b16 %v1003, %v999
        %v1148 = vpack.c.b16 %v1004, %v1000
        %v1149 = vpack.c.b16 %v1009, %v1005
        %v1150 = vpack.c.b16 %v1010, %v1006
        %v1151 = vpack.c.b16 %v1011, %v1007
        %v1152 = vpack.c.b16 %v1012, %v1008
        %v1153 = vpack.c.b16 %v1017, %v1013
        %v1154 = vpack.c.b16 %v1018, %v1014
        %v1155 = vpack.c.b16 %v1019, %v1015
        %v1156 = vpack.c.b16 %v1020, %v1016
        %v1157 = vpack.c.b16 %v1025, %v1021
        %v1158 = vpack.c.b16 %v1026, %v1022
        %v1159 = vpack.c.b16 %v1027, %v1023
        %v1160 = vpack.c.b16 %v1028, %v1024
        %vm1293 = vcmask 130048
        %v1295 = vsel %vm1293, %v565, 0
        %v1298 = vsel %vm1293, %v570, 0
        %v1301 = vsel %vm1293, %v575, 0
        %v1304 = vsel %vm1293, %v580, 0
        %v1307 = vsel %vm1293, %v585, 0
        %v1310 = vsel %vm1293, %v590, 0
        %v1313 = vsel %vm1293, %v595, 0
        %v1316 = vsel %vm1293, %v600, 0
        %1318 = vmatprep.subr.bf16.mxu0 %v1030
        %1319 = vmatpush1.bf16.msra.mxu0 %v1029
        %1320 = vmatprep.subr.bf16.mxu0 %v1034
        %1321 = vmatpush1.bf16.msra.mxu0 %v1033
        %1322 = vmatprep.subr.bf16.mxu0 %v1038
        %1323 = vmatpush1.bf16.msra.mxu0 %v1037
        %1324 = vmatprep.subr.bf16.mxu0 %v1042
        %1325 = vmatpush1.bf16.msra.mxu0 %v1041
        %1326 = vmatprep.subr.bf16.mxu0 %v1046
        %1327 = vmatpush1.bf16.msra.mxu0 %v1045
        %1328 = vmatprep.subr.bf16.mxu0 %v1050
        %1329 = vmatpush1.bf16.msra.mxu0 %v1049
        %1330 = vmatprep.subr.bf16.mxu0 %v1054
        %1331 = vmatpush1.bf16.msra.mxu0 %v1053
        %1332 = vmatprep.subr.bf16.mxu0 %v1058
        %1333 = vmatpush1.bf16.msra.mxu0 %v1057
        %1334 = vmatprep.subr.bf16.mxu0 %v1062
        %1335 = vmatpush1.bf16.msra.mxu0 %v1061
        %1336 = vmatprep.subr.bf16.mxu0 %v1066
        %1337 = vmatpush1.bf16.msra.mxu0 %v1065
        %1338 = vmatprep.subr.bf16.mxu0 %v1070
        %1339 = vmatpush1.bf16.msra.mxu0 %v1069
        %1340 = vmatprep.subr.bf16.mxu0 %v1074
        %1341 = vmatpush1.bf16.msra.mxu0 %v1073
        %1342 = vmatprep.subr.bf16.mxu0 %v1078
        %1343 = vmatpush1.bf16.msra.mxu0 %v1077
        %1344 = vmatprep.subr.bf16.mxu0 %v1082
        %1345 = vmatpush1.bf16.msra.mxu0 %v1081
        %1346 = vmatprep.subr.bf16.mxu0 %v1086
        %1347 = vmatpush1.bf16.msra.mxu0 %v1085
        %1348 = vmatprep.subr.bf16.mxu0 %v1090
        %1349 = vmatpush1.bf16.msra.mxu0 %v1089
        %1350 = vmatprep.mubr.bf16.mxu0 %v562
        %1351 = vmatmul.mubr.bf16.gmra.mrb[0].mxu0 %v561
        %v1352 = vpop.f32.mrb[0].mxu0
        %v1353 = vadd.f32 %v416, %v1352
        %v1354 = vpop.f32.mrb[0].mxu0
        %v1355 = vadd.f32 %v420, %v1354
        %v1356 = vpop.f32.mrb[0].mxu0
        %v1357 = vadd.f32 %v416, %v1356
        %v1358 = vpop.f32.mrb[0].mxu0
        %v1359 = vadd.f32 %v420, %v1358
        %1360 = vmatprep.mubr.bf16.mxu0 %v567
        %1361 = vmatmul.mubr.bf16.gmra.mrb[0].mxu0 %v566
        %v1362 = vpop.f32.mrb[0].mxu0
        %v1363 = vadd.f32 %v416, %v1362
        %v1364 = vpop.f32.mrb[0].mxu0
        %v1365 = vadd.f32 %v420, %v1364
        %v1366 = vpop.f32.mrb[0].mxu0
        %v1367 = vadd.f32 %v416, %v1366
        %v1368 = vpop.f32.mrb[0].mxu0
        %v1369 = vadd.f32 %v420, %v1368
        %1370 = vmatprep.mubr.bf16.mxu0 %v572
        %1371 = vmatmul.mubr.bf16.gmra.mrb[0].mxu0 %v571
        %v1372 = vpop.f32.mrb[0].mxu0
        %v1373 = vadd.f32 %v416, %v1372
        %v1374 = vpop.f32.mrb[0].mxu0
        %v1375 = vadd.f32 %v420, %v1374
        %v1376 = vpop.f32.mrb[0].mxu0
        %v1377 = vadd.f32 %v416, %v1376
        %v1378 = vpop.f32.mrb[0].mxu0
        %v1379 = vadd.f32 %v420, %v1378
        %1380 = vmatprep.mubr.bf16.mxu0 %v577
        %1381 = vmatmul.mubr.bf16.gmra.mrb[0].mxu0 %v576
        %v1382 = vpop.f32.mrb[0].mxu0
        %v1383 = vadd.f32 %v416, %v1382
        %v1384 = vpop.f32.mrb[0].mxu0
        %v1385 = vadd.f32 %v420, %v1384
        %v1386 = vpop.f32.mrb[0].mxu0
        %v1387 = vadd.f32 %v416, %v1386
        %v1388 = vpop.f32.mrb[0].mxu0
        %v1389 = vadd.f32 %v420, %v1388
        %1390 = vmatprep.mubr.bf16.mxu0 %v582
        %1391 = vmatmul.mubr.bf16.gmra.mrb[0].mxu0 %v581
        %v1392 = vpop.f32.mrb[0].mxu0
        %v1393 = vadd.f32 %v416, %v1392
        %v1394 = vpop.f32.mrb[0].mxu0
        %v1395 = vadd.f32 %v420, %v1394
        %v1396 = vpop.f32.mrb[0].mxu0
        %v1397 = vadd.f32 %v416, %v1396
        %v1398 = vpop.f32.mrb[0].mxu0
        %v1399 = vadd.f32 %v420, %v1398
        %1400 = vmatprep.mubr.bf16.mxu0 %v587
        %1401 = vmatmul.mubr.bf16.gmra.mrb[0].mxu0 %v586
        %v1402 = vpop.f32.mrb[0].mxu0
        %v1403 = vadd.f32 %v416, %v1402
        %v1404 = vpop.f32.mrb[0].mxu0
        %v1405 = vadd.f32 %v420, %v1404
        %v1406 = vpop.f32.mrb[0].mxu0
        %v1407 = vadd.f32 %v416, %v1406
        %v1408 = vpop.f32.mrb[0].mxu0
        %v1409 = vadd.f32 %v420, %v1408
        %1410 = vmatprep.mubr.bf16.mxu0 %v592
        %1411 = vmatmul.mubr.bf16.gmra.mrb[0].mxu0 %v591
        %v1412 = vpop.f32.mrb[0].mxu0
        %v1413 = vadd.f32 %v416, %v1412
        %v1414 = vpop.f32.mrb[0].mxu0
        %v1415 = vadd.f32 %v420, %v1414
        %v1416 = vpop.f32.mrb[0].mxu0
        %v1417 = vadd.f32 %v416, %v1416
        %v1418 = vpop.f32.mrb[0].mxu0
        %v1419 = vadd.f32 %v420, %v1418
        %1420 = vmatprep.mubr.bf16.mxu0 %v597
        %1421 = vmatmul.mubr.bf16.gmra.mrb[0].mxu0 %v596
        %v1422 = vpop.f32.mrb[0].mxu0
        %v1423 = vadd.f32 %v416, %v1422
        %v1424 = vpop.f32.mrb[0].mxu0
        %v1425 = vadd.f32 %v420, %v1424
        %v1426 = vpop.f32.mrb[0].mxu0
        %v1427 = vadd.f32 %v416, %v1426
        %v1428 = vpop.f32.mrb[0].mxu0
        %v1429 = vadd.f32 %v420, %v1428
        %1430 = vdwg.mxu0
        %1431 = vmatprep.subr.bf16.mxu0 %v1094
        %1432 = vmatpush1.bf16.msra.mxu0 %v1093
        %1433 = vmatprep.subr.bf16.mxu0 %v1098
        %1434 = vmatpush1.bf16.msra.mxu0 %v1097
        %1435 = vmatprep.subr.bf16.mxu0 %v1102
        %1436 = vmatpush1.bf16.msra.mxu0 %v1101
        %1437 = vmatprep.subr.bf16.mxu0 %v1106
        %1438 = vmatpush1.bf16.msra.mxu0 %v1105
        %1439 = vmatprep.subr.bf16.mxu0 %v1110
        %1440 = vmatpush1.bf16.msra.mxu0 %v1109
        %1441 = vmatprep.subr.bf16.mxu0 %v1114
        %1442 = vmatpush1.bf16.msra.mxu0 %v1113
        %1443 = vmatprep.subr.bf16.mxu0 %v1118
        %1444 = vmatpush1.bf16.msra.mxu0 %v1117
        %1445 = vmatprep.subr.bf16.mxu0 %v1122
        %1446 = vmatpush1.bf16.msra.mxu0 %v1121
        %1447 = vmatprep.subr.bf16.mxu0 %v1126
        %1448 = vmatpush1.bf16.msra.mxu0 %v1125
        %1449 = vmatprep.subr.bf16.mxu0 %v1130
        %1450 = vmatpush1.bf16.msra.mxu0 %v1129
        %1451 = vmatprep.subr.bf16.mxu0 %v1134
        %1452 = vmatpush1.bf16.msra.mxu0 %v1133
        %1453 = vmatprep.subr.bf16.mxu0 %v1138
        %1454 = vmatpush1.bf16.msra.mxu0 %v1137
        %1455 = vmatprep.subr.bf16.mxu0 %v1142
        %1456 = vmatpush1.bf16.msra.mxu0 %v1141
        %1457 = vmatprep.subr.bf16.mxu0 %v1146
        %1458 = vmatpush1.bf16.msra.mxu0 %v1145
        %1459 = vmatprep.subr.bf16.mxu0 %v1150
        %1460 = vmatpush1.bf16.msra.mxu0 %v1149
        %1461 = vmatprep.subr.bf16.mxu0 %v1154
        %1462 = vmatpush1.bf16.msra.mxu0 %v1153
        %1463 = vmatprep.mubr.bf16.mxu0 %v564
        %1464 = vmatmul.mubr.bf16.gmra.mrb[0].mxu0 %v563
        %v1465 = vpop.f32.mrb[0].mxu0
        %v1466 = vadd.f32 %v1353, %v1465
        %v1467 = vpop.f32.mrb[0].mxu0
        %v1468 = vadd.f32 %v1355, %v1467
        %v1469 = vpop.f32.mrb[0].mxu0
        %v1470 = vadd.f32 %v1357, %v1469
        %v1471 = vpop.f32.mrb[0].mxu0
        %v1472 = vadd.f32 %v1359, %v1471
        %1473 = vmatprep.mubr.bf16.mxu0 %v569
        %1474 = vmatmul.mubr.bf16.gmra.mrb[0].mxu0 %v568
        %v1475 = vpop.f32.mrb[0].mxu0
        %v1476 = vadd.f32 %v1363, %v1475
        %v1477 = vpop.f32.mrb[0].mxu0
        %v1478 = vadd.f32 %v1365, %v1477
        %v1479 = vpop.f32.mrb[0].mxu0
        %v1480 = vadd.f32 %v1367, %v1479
        %v1481 = vpop.f32.mrb[0].mxu0
        %v1482 = vadd.f32 %v1369, %v1481
        %1483 = vmatprep.mubr.bf16.mxu0 %v574
        %1484 = vmatmul.mubr.bf16.gmra.mrb[0].mxu0 %v573
        %v1485 = vpop.f32.mrb[0].mxu0
        %v1486 = vadd.f32 %v1373, %v1485
        %v1487 = vpop.f32.mrb[0].mxu0
        %v1488 = vadd.f32 %v1375, %v1487
        %v1489 = vpop.f32.mrb[0].mxu0
        %v1490 = vadd.f32 %v1377, %v1489
        %v1491 = vpop.f32.mrb[0].mxu0
        %v1492 = vadd.f32 %v1379, %v1491
        %1493 = vmatprep.mubr.bf16.mxu0 %v579
        %1494 = vmatmul.mubr.bf16.gmra.mrb[0].mxu0 %v578
        %v1495 = vpop.f32.mrb[0].mxu0
        %v1496 = vadd.f32 %v1383, %v1495
        %v1497 = vpop.f32.mrb[0].mxu0
        %v1498 = vadd.f32 %v1385, %v1497
        %v1499 = vpop.f32.mrb[0].mxu0
        %v1500 = vadd.f32 %v1387, %v1499
        %v1501 = vpop.f32.mrb[0].mxu0
        %v1502 = vadd.f32 %v1389, %v1501
        %1503 = vmatprep.mubr.bf16.mxu0 %v584
        %1504 = vmatmul.mubr.bf16.gmra.mrb[0].mxu0 %v583
        %v1505 = vpop.f32.mrb[0].mxu0
        %v1506 = vadd.f32 %v1393, %v1505
        %v1507 = vpop.f32.mrb[0].mxu0
        %v1508 = vadd.f32 %v1395, %v1507
        %v1509 = vpop.f32.mrb[0].mxu0
        %v1510 = vadd.f32 %v1397, %v1509
        %v1511 = vpop.f32.mrb[0].mxu0
        %v1512 = vadd.f32 %v1399, %v1511
        %1513 = vmatprep.mubr.bf16.mxu0 %v589
        %1514 = vmatmul.mubr.bf16.gmra.mrb[0].mxu0 %v588
        %v1515 = vpop.f32.mrb[0].mxu0
        %v1516 = vadd.f32 %v1403, %v1515
        %v1517 = vpop.f32.mrb[0].mxu0
        %v1518 = vadd.f32 %v1405, %v1517
        %v1519 = vpop.f32.mrb[0].mxu0
        %v1520 = vadd.f32 %v1407, %v1519
        %v1521 = vpop.f32.mrb[0].mxu0
        %v1522 = vadd.f32 %v1409, %v1521
        %1523 = vmatprep.mubr.bf16.mxu0 %v594
        %1524 = vmatmul.mubr.bf16.gmra.mrb[0].mxu0 %v593
        %v1525 = vpop.f32.mrb[0].mxu0
        %v1526 = vadd.f32 %v1413, %v1525
        %v1527 = vpop.f32.mrb[0].mxu0
        %v1528 = vadd.f32 %v1415, %v1527
        %v1529 = vpop.f32.mrb[0].mxu0
        %v1530 = vadd.f32 %v1417, %v1529
        %v1531 = vpop.f32.mrb[0].mxu0
        %v1532 = vadd.f32 %v1419, %v1531
        %1533 = vmatprep.mubr.bf16.mxu0 %v599
        %1534 = vmatmul.mubr.bf16.gmra.mrb[0].mxu0 %v598
        %v1535 = vpop.f32.mrb[0].mxu0
        %v1536 = vadd.f32 %v1423, %v1535
        %v1537 = vpop.f32.mrb[0].mxu0
        %v1538 = vadd.f32 %v1425, %v1537
        %v1539 = vpop.f32.mrb[0].mxu0
        %v1540 = vadd.f32 %v1427, %v1539
        %v1541 = vpop.f32.mrb[0].mxu0
        %v1542 = vadd.f32 %v1429, %v1541
        %1543 = vdwg.mxu0
        %1544 = vmatprep.subr.bf16.mxu0 %v1158
        %1545 = vmatpush1.bf16.msra.mxu0 %v1157
        %1546 = vmatprep.subr.bf16.mxu0 0
        %1547 = vmatpush1.bf16.msra.mxu0 0
        %1548 = vmatprep.subr.bf16.mxu0 0
        %1549 = vmatpush1.bf16.msra.mxu0 0
        %1550 = vmatprep.subr.bf16.mxu0 0
        %1551 = vmatpush1.bf16.msra.mxu0 0
        %1552 = vmatprep.subr.bf16.mxu0 0
        %1553 = vmatpush1.bf16.msra.mxu0 0
        %1554 = vmatprep.subr.bf16.mxu0 0
        %1555 = vmatpush1.bf16.msra.mxu0 0
        %1556 = vmatprep.subr.bf16.mxu0 0
        %1557 = vmatpush1.bf16.msra.mxu0 0
        %1558 = vmatprep.subr.bf16.mxu0 0
        %1559 = vmatpush1.bf16.msra.mxu0 0
        %1560 = vmatprep.subr.bf16.mxu0 0
        %1561 = vmatpush1.bf16.msra.mxu0 0
        %1562 = vmatprep.subr.bf16.mxu0 0
        %1563 = vmatpush1.bf16.msra.mxu0 0
        %1564 = vmatprep.subr.bf16.mxu0 0
        %1565 = vmatpush1.bf16.msra.mxu0 0
        %1566 = vmatprep.subr.bf16.mxu0 0
        %1567 = vmatpush1.bf16.msra.mxu0 0
        %1568 = vmatprep.subr.bf16.mxu0 0
        %1569 = vmatpush1.bf16.msra.mxu0 0
        %1570 = vmatprep.subr.bf16.mxu0 0
        %1571 = vmatpush1.bf16.msra.mxu0 0
        %1572 = vmatprep.subr.bf16.mxu0 0
        %1573 = vmatpush1.bf16.msra.mxu0 0
        %1574 = vmatprep.subr.bf16.mxu0 0
        %1575 = vmatpush1.bf16.msra.mxu0 0
        %1576 = vmatprep.mubr.bf16.mxu0 0
        %1577 = vmatmul.mubr.bf16.gmra.mrb[0].mxu0 %v1295
        %v1578 = vpop.f32.mrb[0].mxu0
        %v1579 = vadd.f32 %v1466, %v1578
        %v1580 = vpop.f32.mrb[0].mxu0
        %v1581 = vadd.f32 %v1468, %v1580
        %v1582 = vpop.f32.mrb[0].mxu0
        %v1583 = vadd.f32 %v1470, %v1582
        %v1584 = vpop.f32.mrb[0].mxu0
        %v1585 = vadd.f32 %v1472, %v1584
        %1586 = vmatprep.mubr.bf16.mxu0 0
        %1587 = vmatmul.mubr.bf16.gmra.mrb[0].mxu0 %v1298
        %v1588 = vpop.f32.mrb[0].mxu0
        %v1589 = vadd.f32 %v1476, %v1588
        %v1590 = vpop.f32.mrb[0].mxu0
        %v1591 = vadd.f32 %v1478, %v1590
        %v1592 = vpop.f32.mrb[0].mxu0
        %v1593 = vadd.f32 %v1480, %v1592
        %v1594 = vpop.f32.mrb[0].mxu0
        %v1595 = vadd.f32 %v1482, %v1594
        %1596 = vmatprep.mubr.bf16.mxu0 0
        %1597 = vmatmul.mubr.bf16.gmra.mrb[0].mxu0 %v1301
        %v1598 = vpop.f32.mrb[0].mxu0
        %v1599 = vadd.f32 %v1486, %v1598
        %v1600 = vpop.f32.mrb[0].mxu0
        %v1601 = vadd.f32 %v1488, %v1600
        %v1602 = vpop.f32.mrb[0].mxu0
        %v1603 = vadd.f32 %v1490, %v1602
        %v1604 = vpop.f32.mrb[0].mxu0
        %v1605 = vadd.f32 %v1492, %v1604
        %1606 = vmatprep.mubr.bf16.mxu0 0
        %1607 = vmatmul.mubr.bf16.gmra.mrb[0].mxu0 %v1304
        %v1608 = vpop.f32.mrb[0].mxu0
        %v1609 = vadd.f32 %v1496, %v1608
        %v1610 = vpop.f32.mrb[0].mxu0
        %v1611 = vadd.f32 %v1498, %v1610
        %v1612 = vpop.f32.mrb[0].mxu0
        %v1613 = vadd.f32 %v1500, %v1612
        %v1614 = vpop.f32.mrb[0].mxu0
        %v1615 = vadd.f32 %v1502, %v1614
        %1616 = vmatprep.mubr.bf16.mxu0 0
        %1617 = vmatmul.mubr.bf16.gmra.mrb[0].mxu0 %v1307
        %v1618 = vpop.f32.mrb[0].mxu0
        %v1619 = vadd.f32 %v1506, %v1618
        %v1620 = vpop.f32.mrb[0].mxu0
        %v1621 = vadd.f32 %v1508, %v1620
        %v1622 = vpop.f32.mrb[0].mxu0
        %v1623 = vadd.f32 %v1510, %v1622
        %v1624 = vpop.f32.mrb[0].mxu0
        %v1625 = vadd.f32 %v1512, %v1624
        %1626 = vmatprep.mubr.bf16.mxu0 0
        %1627 = vmatmul.mubr.bf16.gmra.mrb[0].mxu0 %v1310
        %v1628 = vpop.f32.mrb[0].mxu0
        %v1629 = vadd.f32 %v1516, %v1628
        %v1630 = vpop.f32.mrb[0].mxu0
        %v1631 = vadd.f32 %v1518, %v1630
        %v1632 = vpop.f32.mrb[0].mxu0
        %v1633 = vadd.f32 %v1520, %v1632
        %v1634 = vpop.f32.mrb[0].mxu0
        %v1635 = vadd.f32 %v1522, %v1634
        %1636 = vmatprep.mubr.bf16.mxu0 0
        %1637 = vmatmul.mubr.bf16.gmra.mrb[0].mxu0 %v1313
        %v1638 = vpop.f32.mrb[0].mxu0
        %v1639 = vadd.f32 %v1526, %v1638
        %v1640 = vpop.f32.mrb[0].mxu0
        %v1641 = vadd.f32 %v1528, %v1640
        %v1642 = vpop.f32.mrb[0].mxu0
        %v1643 = vadd.f32 %v1530, %v1642
        %v1644 = vpop.f32.mrb[0].mxu0
        %v1645 = vadd.f32 %v1532, %v1644
        %1646 = vmatprep.mubr.bf16.mxu0 0
        %1647 = vmatmul.mubr.bf16.gmra.mrb[0].mxu0 %v1316
        %v1648 = vpop.f32.mrb[0].mxu0
        %v1649 = vadd.f32 %v1536, %v1648
        %v1650 = vpop.f32.mrb[0].mxu0
        %v1651 = vadd.f32 %v1538, %v1650
        %v1652 = vpop.f32.mrb[0].mxu0
        %v1653 = vadd.f32 %v1540, %v1652
        %v1654 = vpop.f32.mrb[0].mxu0
        %v1655 = vadd.f32 %v1542, %v1654
        %1656 = vdwg.mxu0
        %1657 = vmatprep.subr.bf16.mxu0 %v1032
        %1658 = vmatpush1.bf16.msra.mxu0 %v1031
        %1659 = vmatprep.subr.bf16.mxu0 %v1036
        %1660 = vmatpush1.bf16.msra.mxu0 %v1035
        %1661 = vmatprep.subr.bf16.mxu0 %v1040
        %1662 = vmatpush1.bf16.msra.mxu0 %v1039
        %1663 = vmatprep.subr.bf16.mxu0 %v1044
        %1664 = vmatpush1.bf16.msra.mxu0 %v1043
        %1665 = vmatprep.subr.bf16.mxu0 %v1048
        %1666 = vmatpush1.bf16.msra.mxu0 %v1047
        %1667 = vmatprep.subr.bf16.mxu0 %v1052
        %1668 = vmatpush1.bf16.msra.mxu0 %v1051
        %1669 = vmatprep.subr.bf16.mxu0 %v1056
        %1670 = vmatpush1.bf16.msra.mxu0 %v1055
        %1671 = vmatprep.subr.bf16.mxu0 %v1060
        %1672 = vmatpush1.bf16.msra.mxu0 %v1059
        %1673 = vmatprep.subr.bf16.mxu0 %v1064
        %1674 = vmatpush1.bf16.msra.mxu0 %v1063
        %1675 = vmatprep.subr.bf16.mxu0 %v1068
        %1676 = vmatpush1.bf16.msra.mxu0 %v1067
        %1677 = vmatprep.subr.bf16.mxu0 %v1072
        %1678 = vmatpush1.bf16.msra.mxu0 %v1071
        %1679 = vmatprep.subr.bf16.mxu0 %v1076
        %1680 = vmatpush1.bf16.msra.mxu0 %v1075
        %1681 = vmatprep.subr.bf16.mxu0 %v1080
        %1682 = vmatpush1.bf16.msra.mxu0 %v1079
        %1683 = vmatprep.subr.bf16.mxu0 %v1084
        %1684 = vmatpush1.bf16.msra.mxu0 %v1083
        %1685 = vmatprep.subr.bf16.mxu0 %v1088
        %1686 = vmatpush1.bf16.msra.mxu0 %v1087
        %1687 = vmatprep.subr.bf16.mxu0 %v1092
        %1688 = vmatpush1.bf16.msra.mxu0 %v1091
        %1689 = vmatprep.mubr.bf16.mxu0 %v562
        %1690 = vmatmul.mubr.bf16.gmra.mrb[0].mxu0 %v561
        %v1691 = vpop.f32.mrb[0].mxu0
        %v1692 = vadd.f32 %v424, %v1691
        %v1693 = vpop.f32.mrb[0].mxu0
        %v1694 = vadd.f32 %v428, %v1693
        %v1695 = vpop.f32.mrb[0].mxu0
        %v1696 = vadd.f32 %v424, %v1695
        %v1697 = vpop.f32.mrb[0].mxu0
        %v1698 = vadd.f32 %v428, %v1697
        %1699 = vmatprep.mubr.bf16.mxu0 %v567
        %1700 = vmatmul.mubr.bf16.gmra.mrb[0].mxu0 %v566
        %v1701 = vpop.f32.mrb[0].mxu0
        %v1702 = vadd.f32 %v424, %v1701
        %v1703 = vpop.f32.mrb[0].mxu0
        %v1704 = vadd.f32 %v428, %v1703
        %v1705 = vpop.f32.mrb[0].mxu0
        %v1706 = vadd.f32 %v424, %v1705
        %v1707 = vpop.f32.mrb[0].mxu0
        %v1708 = vadd.f32 %v428, %v1707
        %1709 = vmatprep.mubr.bf16.mxu0 %v572
        %1710 = vmatmul.mubr.bf16.gmra.mrb[0].mxu0 %v571
        %v1711 = vpop.f32.mrb[0].mxu0
        %v1712 = vadd.f32 %v424, %v1711
        %v1713 = vpop.f32.mrb[0].mxu0
        %v1714 = vadd.f32 %v428, %v1713
        %v1715 = vpop.f32.mrb[0].mxu0
        %v1716 = vadd.f32 %v424, %v1715
        %v1717 = vpop.f32.mrb[0].mxu0
        %v1718 = vadd.f32 %v428, %v1717
        %1719 = vmatprep.mubr.bf16.mxu0 %v577
        %1720 = vmatmul.mubr.bf16.gmra.mrb[0].mxu0 %v576
        %v1721 = vpop.f32.mrb[0].mxu0
        %v1722 = vadd.f32 %v424, %v1721
        %v1723 = vpop.f32.mrb[0].mxu0
        %v1724 = vadd.f32 %v428, %v1723
        %v1725 = vpop.f32.mrb[0].mxu0
        %v1726 = vadd.f32 %v424, %v1725
        %v1727 = vpop.f32.mrb[0].mxu0
        %v1728 = vadd.f32 %v428, %v1727
        %1729 = vmatprep.mubr.bf16.mxu0 %v582
        %1730 = vmatmul.mubr.bf16.gmra.mrb[0].mxu0 %v581
        %v1731 = vpop.f32.mrb[0].mxu0
        %v1732 = vadd.f32 %v424, %v1731
        %v1733 = vpop.f32.mrb[0].mxu0
        %v1734 = vadd.f32 %v428, %v1733
        %v1735 = vpop.f32.mrb[0].mxu0
        %v1736 = vadd.f32 %v424, %v1735
        %v1737 = vpop.f32.mrb[0].mxu0
        %v1738 = vadd.f32 %v428, %v1737
        %1739 = vmatprep.mubr.bf16.mxu0 %v587
        %1740 = vmatmul.mubr.bf16.gmra.mrb[0].mxu0 %v586
        %v1741 = vpop.f32.mrb[0].mxu0
        %v1742 = vadd.f32 %v424, %v1741
        %v1743 = vpop.f32.mrb[0].mxu0
        %v1744 = vadd.f32 %v428, %v1743
        %v1745 = vpop.f32.mrb[0].mxu0
        %v1746 = vadd.f32 %v424, %v1745
        %v1747 = vpop.f32.mrb[0].mxu0
        %v1748 = vadd.f32 %v428, %v1747
        %1749 = vmatprep.mubr.bf16.mxu0 %v592
        %1750 = vmatmul.mubr.bf16.gmra.mrb[0].mxu0 %v591
        %v1751 = vpop.f32.mrb[0].mxu0
        %v1752 = vadd.f32 %v424, %v1751
        %v1753 = vpop.f32.mrb[0].mxu0
        %v1754 = vadd.f32 %v428, %v1753
        %v1755 = vpop.f32.mrb[0].mxu0
        %v1756 = vadd.f32 %v424, %v1755
        %v1757 = vpop.f32.mrb[0].mxu0
        %v1758 = vadd.f32 %v428, %v1757
        %1759 = vmatprep.mubr.bf16.mxu0 %v597
        %1760 = vmatmul.mubr.bf16.gmra.mrb[0].mxu0 %v596
        %v1761 = vpop.f32.mrb[0].mxu0
        %v1762 = vadd.f32 %v424, %v1761
        %v1763 = vpop.f32.mrb[0].mxu0
        %v1764 = vadd.f32 %v428, %v1763
        %v1765 = vpop.f32.mrb[0].mxu0
        %v1766 = vadd.f32 %v424, %v1765
        %v1767 = vpop.f32.mrb[0].mxu0
        %v1768 = vadd.f32 %v428, %v1767
        %1769 = vdwg.mxu0
        %1770 = vmatprep.subr.bf16.mxu0 %v1096
        %1771 = vmatpush1.bf16.msra.mxu0 %v1095
        %1772 = vmatprep.subr.bf16.mxu0 %v1100
        %1773 = vmatpush1.bf16.msra.mxu0 %v1099
        %1774 = vmatprep.subr.bf16.mxu0 %v1104
        %1775 = vmatpush1.bf16.msra.mxu0 %v1103
        %1776 = vmatprep.subr.bf16.mxu0 %v1108
        %1777 = vmatpush1.bf16.msra.mxu0 %v1107
        %1778 = vmatprep.subr.bf16.mxu0 %v1112
        %1779 = vmatpush1.bf16.msra.mxu0 %v1111
        %1780 = vmatprep.subr.bf16.mxu0 %v1116
        %1781 = vmatpush1.bf16.msra.mxu0 %v1115
        %1782 = vmatprep.subr.bf16.mxu0 %v1120
        %1783 = vmatpush1.bf16.msra.mxu0 %v1119
        %1784 = vmatprep.subr.bf16.mxu0 %v1124
        %1785 = vmatpush1.bf16.msra.mxu0 %v1123
        %1786 = vmatprep.subr.bf16.mxu0 %v1128
        %1787 = vmatpush1.bf16.msra.mxu0 %v1127
        %1788 = vmatprep.subr.bf16.mxu0 %v1132
        %1789 = vmatpush1.bf16.msra.mxu0 %v1131
        %1790 = vmatprep.subr.bf16.mxu0 %v1136
        %1791 = vmatpush1.bf16.msra.mxu0 %v1135
        %1792 = vmatprep.subr.bf16.mxu0 %v1140
        %1793 = vmatpush1.bf16.msra.mxu0 %v1139
        %1794 = vmatprep.subr.bf16.mxu0 %v1144
        %1795 = vmatpush1.bf16.msra.mxu0 %v1143
        %1796 = vmatprep.subr.bf16.mxu0 %v1148
        %1797 = vmatpush1.bf16.msra.mxu0 %v1147
        %1798 = vmatprep.subr.bf16.mxu0 %v1152
        %1799 = vmatpush1.bf16.msra.mxu0 %v1151
        %1800 = vmatprep.subr.bf16.mxu0 %v1156
        %1801 = vmatpush1.bf16.msra.mxu0 %v1155
        %1802 = vmatprep.mubr.bf16.mxu0 %v564
        %1803 = vmatmul.mubr.bf16.gmra.mrb[0].mxu0 %v563
        %v1804 = vpop.f32.mrb[0].mxu0
        %v1805 = vadd.f32 %v1692, %v1804
        %v1806 = vpop.f32.mrb[0].mxu0
        %v1807 = vadd.f32 %v1694, %v1806
        %v1808 = vpop.f32.mrb[0].mxu0
        %v1809 = vadd.f32 %v1696, %v1808
        %v1810 = vpop.f32.mrb[0].mxu0
        %v1811 = vadd.f32 %v1698, %v1810
        %1812 = vmatprep.mubr.bf16.mxu0 %v569
        %1813 = vmatmul.mubr.bf16.gmra.mrb[0].mxu0 %v568
        %v1814 = vpop.f32.mrb[0].mxu0
        %v1815 = vadd.f32 %v1702, %v1814
        %v1816 = vpop.f32.mrb[0].mxu0
        %v1817 = vadd.f32 %v1704, %v1816
        %v1818 = vpop.f32.mrb[0].mxu0
        %v1819 = vadd.f32 %v1706, %v1818
        %v1820 = vpop.f32.mrb[0].mxu0
        %v1821 = vadd.f32 %v1708, %v1820
        %1822 = vmatprep.mubr.bf16.mxu0 %v574
        %1823 = vmatmul.mubr.bf16.gmra.mrb[0].mxu0 %v573
        %v1824 = vpop.f32.mrb[0].mxu0
        %v1825 = vadd.f32 %v1712, %v1824
        %v1826 = vpop.f32.mrb[0].mxu0
        %v1827 = vadd.f32 %v1714, %v1826
        %v1828 = vpop.f32.mrb[0].mxu0
        %v1829 = vadd.f32 %v1716, %v1828
        %v1830 = vpop.f32.mrb[0].mxu0
        %v1831 = vadd.f32 %v1718, %v1830
        %1832 = vmatprep.mubr.bf16.mxu0 %v579
        %1833 = vmatmul.mubr.bf16.gmra.mrb[0].mxu0 %v578
        %v1834 = vpop.f32.mrb[0].mxu0
        %v1835 = vadd.f32 %v1722, %v1834
        %v1836 = vpop.f32.mrb[0].mxu0
        %v1837 = vadd.f32 %v1724, %v1836
        %v1838 = vpop.f32.mrb[0].mxu0
        %v1839 = vadd.f32 %v1726, %v1838
        %v1840 = vpop.f32.mrb[0].mxu0
        %v1841 = vadd.f32 %v1728, %v1840
        %1842 = vmatprep.mubr.bf16.mxu0 %v584
        %1843 = vmatmul.mubr.bf16.gmra.mrb[0].mxu0 %v583
        %v1844 = vpop.f32.mrb[0].mxu0
        %v1845 = vadd.f32 %v1732, %v1844
        %v1846 = vpop.f32.mrb[0].mxu0
        %v1847 = vadd.f32 %v1734, %v1846
        %v1848 = vpop.f32.mrb[0].mxu0
        %v1849 = vadd.f32 %v1736, %v1848
        %v1850 = vpop.f32.mrb[0].mxu0
        %v1851 = vadd.f32 %v1738, %v1850
        %1852 = vmatprep.mubr.bf16.mxu0 %v589
        %1853 = vmatmul.mubr.bf16.gmra.mrb[0].mxu0 %v588
        %v1854 = vpop.f32.mrb[0].mxu0
        %v1855 = vadd.f32 %v1742, %v1854
        %v1856 = vpop.f32.mrb[0].mxu0
        %v1857 = vadd.f32 %v1744, %v1856
        %v1858 = vpop.f32.mrb[0].mxu0
        %v1859 = vadd.f32 %v1746, %v1858
        %v1860 = vpop.f32.mrb[0].mxu0
        %v1861 = vadd.f32 %v1748, %v1860
        %1862 = vmatprep.mubr.bf16.mxu0 %v594
        %1863 = vmatmul.mubr.bf16.gmra.mrb[0].mxu0 %v593
        %v1864 = vpop.f32.mrb[0].mxu0
        %v1865 = vadd.f32 %v1752, %v1864
        %v1866 = vpop.f32.mrb[0].mxu0
        %v1867 = vadd.f32 %v1754, %v1866
        %v1868 = vpop.f32.mrb[0].mxu0
        %v1869 = vadd.f32 %v1756, %v1868
        %v1870 = vpop.f32.mrb[0].mxu0
        %v1871 = vadd.f32 %v1758, %v1870
        %1872 = vmatprep.mubr.bf16.mxu0 %v599
        %1873 = vmatmul.mubr.bf16.gmra.mrb[0].mxu0 %v598
        %v1874 = vpop.f32.mrb[0].mxu0
        %v1875 = vadd.f32 %v1762, %v1874
        %v1876 = vpop.f32.mrb[0].mxu0
        %v1877 = vadd.f32 %v1764, %v1876
        %v1878 = vpop.f32.mrb[0].mxu0
        %v1879 = vadd.f32 %v1766, %v1878
        %v1880 = vpop.f32.mrb[0].mxu0
        %v1881 = vadd.f32 %v1768, %v1880
        %1882 = vdwg.mxu0
        %1883 = vmatprep.subr.bf16.mxu0 %v1160
        %1884 = vmatpush1.bf16.msra.mxu0 %v1159
        %1885 = vmatprep.subr.bf16.mxu0 0
        %1886 = vmatpush1.bf16.msra.mxu0 0
        %1887 = vmatprep.subr.bf16.mxu0 0
        %1888 = vmatpush1.bf16.msra.mxu0 0
        %1889 = vmatprep.subr.bf16.mxu0 0
        %1890 = vmatpush1.bf16.msra.mxu0 0
        %1891 = vmatprep.subr.bf16.mxu0 0
        %1892 = vmatpush1.bf16.msra.mxu0 0
        %1893 = vmatprep.subr.bf16.mxu0 0
        %1894 = vmatpush1.bf16.msra.mxu0 0
        %1895 = vmatprep.subr.bf16.mxu0 0
        %1896 = vmatpush1.bf16.msra.mxu0 0
        %1897 = vmatprep.subr.bf16.mxu0 0
        %1898 = vmatpush1.bf16.msra.mxu0 0
        %1899 = vmatprep.subr.bf16.mxu0 0
        %1900 = vmatpush1.bf16.msra.mxu0 0
        %1901 = vmatprep.subr.bf16.mxu0 0
        %1902 = vmatpush1.bf16.msra.mxu0 0
        %1903 = vmatprep.subr.bf16.mxu0 0
        %1904 = vmatpush1.bf16.msra.mxu0 0
        %1905 = vmatprep.subr.bf16.mxu0 0
        %1906 = vmatpush1.bf16.msra.mxu0 0
        %1907 = vmatprep.subr.bf16.mxu0 0
        %1908 = vmatpush1.bf16.msra.mxu0 0
        %1909 = vmatprep.subr.bf16.mxu0 0
        %1910 = vmatpush1.bf16.msra.mxu0 0
        %1911 = vmatprep.subr.bf16.mxu0 0
        %1912 = vmatpush1.bf16.msra.mxu0 0
        %1913 = vmatprep.subr.bf16.mxu0 0
        %1914 = vmatpush1.bf16.msra.mxu0 0
        %1915 = vmatprep.mubr.bf16.mxu0 0
        %1916 = vmatmul.mubr.bf16.gmra.mrb[0].mxu0 %v1295
        %v1917 = vpop.f32.mrb[0].mxu0
        %v1918 = vadd.f32 %v1805, %v1917
        %v1919 = vpop.f32.mrb[0].mxu0
        %v1920 = vadd.f32 %v1807, %v1919
        %v1921 = vpop.f32.mrb[0].mxu0
        %v1922 = vadd.f32 %v1809, %v1921
        %v1923 = vpop.f32.mrb[0].mxu0
        %v1924 = vadd.f32 %v1811, %v1923
        %1925 = vmatprep.mubr.bf16.mxu0 0
        %1926 = vmatmul.mubr.bf16.gmra.mrb[0].mxu0 %v1298
        %v1927 = vpop.f32.mrb[0].mxu0
        %v1928 = vadd.f32 %v1815, %v1927
        %v1929 = vpop.f32.mrb[0].mxu0
        %v1930 = vadd.f32 %v1817, %v1929
        %v1931 = vpop.f32.mrb[0].mxu0
        %v1932 = vadd.f32 %v1819, %v1931
        %v1933 = vpop.f32.mrb[0].mxu0
        %v1934 = vadd.f32 %v1821, %v1933
        %1935 = vmatprep.mubr.bf16.mxu0 0
        %1936 = vmatmul.mubr.bf16.gmra.mrb[0].mxu0 %v1301
        %v1937 = vpop.f32.mrb[0].mxu0
        %v1938 = vadd.f32 %v1825, %v1937
        %v1939 = vpop.f32.mrb[0].mxu0
        %v1940 = vadd.f32 %v1827, %v1939
        %v1941 = vpop.f32.mrb[0].mxu0
        %v1942 = vadd.f32 %v1829, %v1941
        %v1943 = vpop.f32.mrb[0].mxu0
        %v1944 = vadd.f32 %v1831, %v1943
        %1945 = vmatprep.mubr.bf16.mxu0 0
        %1946 = vmatmul.mubr.bf16.gmra.mrb[0].mxu0 %v1304
        %v1947 = vpop.f32.mrb[0].mxu0
        %v1948 = vadd.f32 %v1835, %v1947
        %v1949 = vpop.f32.mrb[0].mxu0
        %v1950 = vadd.f32 %v1837, %v1949
        %v1951 = vpop.f32.mrb[0].mxu0
        %v1952 = vadd.f32 %v1839, %v1951
        %v1953 = vpop.f32.mrb[0].mxu0
        %v1954 = vadd.f32 %v1841, %v1953
        %1955 = vmatprep.mubr.bf16.mxu0 0
        %1956 = vmatmul.mubr.bf16.gmra.mrb[0].mxu0 %v1307
        %v1957 = vpop.f32.mrb[0].mxu0
        %v1958 = vadd.f32 %v1845, %v1957
        %v1959 = vpop.f32.mrb[0].mxu0
        %v1960 = vadd.f32 %v1847, %v1959
        %v1961 = vpop.f32.mrb[0].mxu0
        %v1962 = vadd.f32 %v1849, %v1961
        %v1963 = vpop.f32.mrb[0].mxu0
        %v1964 = vadd.f32 %v1851, %v1963
        %1965 = vmatprep.mubr.bf16.mxu0 0
        %1966 = vmatmul.mubr.bf16.gmra.mrb[0].mxu0 %v1310
        %v1967 = vpop.f32.mrb[0].mxu0
        %v1968 = vadd.f32 %v1855, %v1967
        %v1969 = vpop.f32.mrb[0].mxu0
        %v1970 = vadd.f32 %v1857, %v1969
        %v1971 = vpop.f32.mrb[0].mxu0
        %v1972 = vadd.f32 %v1859, %v1971
        %v1973 = vpop.f32.mrb[0].mxu0
        %v1974 = vadd.f32 %v1861, %v1973
        %1975 = vmatprep.mubr.bf16.mxu0 0
        %1976 = vmatmul.mubr.bf16.gmra.mrb[0].mxu0 %v1313
        %v1977 = vpop.f32.mrb[0].mxu0
        %v1978 = vadd.f32 %v1865, %v1977
        %v1979 = vpop.f32.mrb[0].mxu0
        %v1980 = vadd.f32 %v1867, %v1979
        %v1981 = vpop.f32.mrb[0].mxu0
        %v1982 = vadd.f32 %v1869, %v1981
        %v1983 = vpop.f32.mrb[0].mxu0
        %v1984 = vadd.f32 %v1871, %v1983
        %1985 = vmatprep.mubr.bf16.mxu0 0
        %1986 = vmatmul.mubr.bf16.gmra.mrb[0].mxu0 %v1316
        %v1987 = vpop.f32.mrb[0].mxu0
        %v1988 = vadd.f32 %v1875, %v1987
        %v1989 = vpop.f32.mrb[0].mxu0
        %v1990 = vadd.f32 %v1877, %v1989
        %v1991 = vpop.f32.mrb[0].mxu0
        %v1992 = vadd.f32 %v1879, %v1991
        %v1993 = vpop.f32.mrb[0].mxu0
        %v1994 = vadd.f32 %v1881, %v1993
        %1995 = vdwg.mxu0
        %v1996 = vmax.f32 %v1579, 0.0
        %v1997 = vmax.f32 %v1581, 0.0
        %v1998 = vmax.f32 %v1918, 0.0
        %v1999 = vmax.f32 %v1920, 0.0
        %v2000 = vmax.f32 %v1583, 0.0
        %v2001 = vmax.f32 %v1585, 0.0
        %v2002 = vmax.f32 %v1922, 0.0
        %v2003 = vmax.f32 %v1924, 0.0
        %v2004 = vmax.f32 %v1589, 0.0
        %v2005 = vmax.f32 %v1591, 0.0
        %v2006 = vmax.f32 %v1928, 0.0
        %v2007 = vmax.f32 %v1930, 0.0
        %v2008 = vmax.f32 %v1593, 0.0
        %v2009 = vmax.f32 %v1595, 0.0
        %v2010 = vmax.f32 %v1932, 0.0
        %v2011 = vmax.f32 %v1934, 0.0
        %v2012 = vmax.f32 %v1599, 0.0
        %v2013 = vmax.f32 %v1601, 0.0
        %v2014 = vmax.f32 %v1938, 0.0
        %v2015 = vmax.f32 %v1940, 0.0
        %v2016 = vmax.f32 %v1603, 0.0
        %v2017 = vmax.f32 %v1605, 0.0
        %v2018 = vmax.f32 %v1942, 0.0
        %v2019 = vmax.f32 %v1944, 0.0
        %v2020 = vmax.f32 %v1609, 0.0
        %v2021 = vmax.f32 %v1611, 0.0
        %v2022 = vmax.f32 %v1948, 0.0
        %v2023 = vmax.f32 %v1950, 0.0
        %v2024 = vmax.f32 %v1613, 0.0
        %v2025 = vmax.f32 %v1615, 0.0
        %v2026 = vmax.f32 %v1952, 0.0
        %v2027 = vmax.f32 %v1954, 0.0
        %v2028 = vmax.f32 %v1619, 0.0
        %v2029 = vmax.f32 %v1621, 0.0
        %v2030 = vmax.f32 %v1958, 0.0
        %v2031 = vmax.f32 %v1960, 0.0
        %v2032 = vmax.f32 %v1623, 0.0
        %v2033 = vmax.f32 %v1625, 0.0
        %v2034 = vmax.f32 %v1962, 0.0
        %v2035 = vmax.f32 %v1964, 0.0
        %v2036 = vmax.f32 %v1629, 0.0
        %v2037 = vmax.f32 %v1631, 0.0
        %v2038 = vmax.f32 %v1968, 0.0
        %v2039 = vmax.f32 %v1970, 0.0
        %v2040 = vmax.f32 %v1633, 0.0
        %v2041 = vmax.f32 %v1635, 0.0
        %v2042 = vmax.f32 %v1972, 0.0
        %v2043 = vmax.f32 %v1974, 0.0
        %v2044 = vmax.f32 %v1639, 0.0
        %v2045 = vmax.f32 %v1641, 0.0
        %v2046 = vmax.f32 %v1978, 0.0
        %v2047 = vmax.f32 %v1980, 0.0
        %v2048 = vmax.f32 %v1643, 0.0
        %v2049 = vmax.f32 %v1645, 0.0
        %v2050 = vmax.f32 %v1982, 0.0
        %v2051 = vmax.f32 %v1984, 0.0
        %v2052 = vmax.f32 %v1649, 0.0
        %v2053 = vmax.f32 %v1651, 0.0
        %v2054 = vmax.f32 %v1988, 0.0
        %v2055 = vmax.f32 %v1990, 0.0
        %v2056 = vmax.f32 %v1653, 0.0
        %v2057 = vmax.f32 %v1655, 0.0
        %v2058 = vmax.f32 %v1992, 0.0
        %v2059 = vmax.f32 %v1994, 0.0
        %v2060 = vpack.c.bf16 %v2000, %v1996
        %v2061 = vpack.c.bf16 %v2001, %v1997
        %v2062 = vpack.c.bf16 %v2002, %v1998
        %v2063 = vpack.c.bf16 %v2003, %v1999
        %v2064 = vpack.c.bf16 %v2008, %v2004
        %v2065 = vpack.c.bf16 %v2009, %v2005
        %v2066 = vpack.c.bf16 %v2010, %v2006
        %v2067 = vpack.c.bf16 %v2011, %v2007
        %v2068 = vpack.c.bf16 %v2016, %v2012
        %v2069 = vpack.c.bf16 %v2017, %v2013
        %v2070 = vpack.c.bf16 %v2018, %v2014
        %v2071 = vpack.c.bf16 %v2019, %v2015
        %v2072 = vpack.c.bf16 %v2024, %v2020
        %v2073 = vpack.c.bf16 %v2025, %v2021
        %v2074 = vpack.c.bf16 %v2026, %v2022
        %v2075 = vpack.c.bf16 %v2027, %v2023
        %v2076 = vpack.c.bf16 %v2032, %v2028
        %v2077 = vpack.c.bf16 %v2033, %v2029
        %v2078 = vpack.c.bf16 %v2034, %v2030
        %v2079 = vpack.c.bf16 %v2035, %v2031
        %v2080 = vpack.c.bf16 %v2040, %v2036
        %v2081 = vpack.c.bf16 %v2041, %v2037
        %v2082 = vpack.c.bf16 %v2042, %v2038
        %v2083 = vpack.c.bf16 %v2043, %v2039
        %v2084 = vpack.c.bf16 %v2048, %v2044
        %v2085 = vpack.c.bf16 %v2049, %v2045
        %v2086 = vpack.c.bf16 %v2050, %v2046
        %v2087 = vpack.c.bf16 %v2051, %v2047
        %v2088 = vpack.c.bf16 %v2056, %v2052
        %v2089 = vpack.c.bf16 %v2057, %v2053
        %v2090 = vpack.c.bf16 %v2058, %v2054
        %v2091 = vpack.c.bf16 %v2059, %v2055
        %v2092 = vld [vmem:[%s3] sm:$0xf]
        %v2093 = vld [vmem:[%s3 + $0x4] sm:$0xf]
        %v2094 = vld [vmem:[%s3 + $0x8] sm:$0xf]
        %v2095 = vld [vmem:[%s3 + $0xc] sm:$0xf]
        %v2096 = vld [vmem:[%s3 + $0x10] sm:$0xf]
        %v2097 = vld [vmem:[%s3 + $0x14] sm:$0xf]
        %v2098 = vld [vmem:[%s3 + $0x18] sm:$0xf]
        %v2099 = vld [vmem:[%s3 + $0x1c] sm:$0xf]
        %v2100 = vld [vmem:[%s3 + $0x20] sm:$0xf]
        %v2101 = vld [vmem:[%s3 + $0x24] sm:$0xf]
        %v2102 = vld [vmem:[%s3 + $0x28] sm:$0xf]
        %v2103 = vld [vmem:[%s3 + $0x2c] sm:$0xf]
        %v2104 = vld [vmem:[%s3 + $0x30] sm:$0xf]
        %v2105 = vld [vmem:[%s3 + $0x34] sm:$0xf]
        %v2106 = vld [vmem:[%s3 + $0x38] sm:$0xf]
        %v2107 = vld [vmem:[%s3 + $0x3c] sm:$0xf]
        %v2108 = vld [vmem:[%s3 + $0x40] sm:$0xf]
        %v2109 = vld [vmem:[%s3 + $0x44] sm:$0xf]
        %v2110 = vld [vmem:[%s3 + $0x48] sm:$0xf]
        %v2111 = vld [vmem:[%s3 + $0x4c] sm:$0xf]
        %v2112 = vld [vmem:[%s3 + $0x50] sm:$0xf]
        %v2113 = vld [vmem:[%s3 + $0x54] sm:$0xf]
        %v2114 = vld [vmem:[%s3 + $0x58] sm:$0xf]
        %v2115 = vld [vmem:[%s3 + $0x5c] sm:$0xf]
        %v2116 = vld [vmem:[%s3 + $0x60] sm:$0xf]
        %v2117 = vld [vmem:[%s3 + $0x64] sm:$0xf]
        %v2118 = vld [vmem:[%s3 + $0x68] sm:$0xf]
        %v2119 = vld [vmem:[%s3 + $0x6c] sm:$0xf]
        %v2120 = vld [vmem:[%s3 + $0x70] sm:$0xf]
        %v2121 = vld [vmem:[%s3 + $0x74] sm:$0xf]
        %v2122 = vld [vmem:[%s3 + $0x78] sm:$0xf]
        %v2123 = vld [vmem:[%s3 + $0x7c] sm:$0xf]
        %v2124 = vld [vmem:[%s3 + $0x80] sm:$0xf]
        %v2125 = vld [vmem:[%s3 + $0x84] sm:$0xf]
        %v2126 = vld [vmem:[%s3 + $0x88] sm:$0xf]
        %v2127 = vld [vmem:[%s3 + $0x8c] sm:$0xf]
        %v2128 = vld [vmem:[%s3 + $0x90] sm:$0xf]
        %v2129 = vld [vmem:[%s3 + $0x94] sm:$0xf]
        %v2130 = vld [vmem:[%s3 + $0x98] sm:$0xf]
        %v2131 = vld [vmem:[%s3 + $0x9c] sm:$0xf]
        %v2132 = vld [vmem:[%s3 + $0xa0] sm:$0xf]
        %v2133 = vld [vmem:[%s3 + $0xa4] sm:$0xf]
        %v2134 = vld [vmem:[%s3 + $0xa8] sm:$0xf]
        %v2135 = vld [vmem:[%s3 + $0xac] sm:$0xf]
        %v2136 = vld [vmem:[%s3 + $0xb0] sm:$0xf]
        %v2137 = vld [vmem:[%s3 + $0xb4] sm:$0xf]
        %v2138 = vld [vmem:[%s3 + $0xb8] sm:$0xf]
        %v2139 = vld [vmem:[%s3 + $0xbc] sm:$0xf]
        %v2140 = vld [vmem:[%s3 + $0xc0] sm:$0xf]
        %v2141 = vld [vmem:[%s3 + $0xc4] sm:$0xf]
        %v2142 = vld [vmem:[%s3 + $0xc8] sm:$0xf]
        %v2143 = vld [vmem:[%s3 + $0xcc] sm:$0xf]
        %v2144 = vld [vmem:[%s3 + $0xd0] sm:$0xf]
        %v2145 = vld [vmem:[%s3 + $0xd4] sm:$0xf]
        %v2146 = vld [vmem:[%s3 + $0xd8] sm:$0xf]
        %v2147 = vld [vmem:[%s3 + $0xdc] sm:$0xf]
        %v2148 = vld [vmem:[%s3 + $0xe0] sm:$0xf]
        %v2149 = vld [vmem:[%s3 + $0xe4] sm:$0xf]
        %v2150 = vld [vmem:[%s3 + $0xe8] sm:$0xf]
        %v2151 = vld [vmem:[%s3 + $0xec] sm:$0xf]
        %v2152 = vld [vmem:[%s3 + $0xf0] sm:$0xf]
        %v2153 = vld [vmem:[%s3 + $0xf4] sm:$0xf]
        %v2154 = vld [vmem:[%s3 + $0xf8] sm:$0xf]
        %v2155 = vld [vmem:[%s3 + $0xfc] sm:$0xf]
        %v2220 = vunpack.c.l.b16 %v2092
        %v2221 = vunpack.c.l.b16 %v2093
        %v2222 = vunpack.c.l.b16 %v2094
        %v2223 = vunpack.c.l.b16 %v2095
        %v2224 = vunpack.c.l.b16 %v2096
        %v2225 = vunpack.c.l.b16 %v2097
        %v2226 = vunpack.c.l.b16 %v2098
        %v2227 = vunpack.c.l.b16 %v2099
        %v2228 = vunpack.c.l.b16 %v2100
        %v2229 = vunpack.c.l.b16 %v2101
        %v2230 = vunpack.c.l.b16 %v2102
        %v2231 = vunpack.c.l.b16 %v2103
        %v2232 = vunpack.c.l.b16 %v2104
        %v2233 = vunpack.c.l.b16 %v2105
        %v2234 = vunpack.c.l.b16 %v2106
        %v2235 = vunpack.c.l.b16 %v2107
        %v2236 = vunpack.c.l.b16 %v2108
        %v2237 = vunpack.c.l.b16 %v2109
        %v2238 = vunpack.c.l.b16 %v2110
        %v2239 = vunpack.c.l.b16 %v2111
        %v2240 = vunpack.c.l.b16 %v2112
        %v2241 = vunpack.c.l.b16 %v2113
        %v2242 = vunpack.c.l.b16 %v2114
        %v2243 = vunpack.c.l.b16 %v2115
        %v2244 = vunpack.c.l.b16 %v2116
        %v2245 = vunpack.c.l.b16 %v2117
        %v2246 = vunpack.c.l.b16 %v2118
        %v2247 = vunpack.c.l.b16 %v2119
        %v2248 = vunpack.c.l.b16 %v2120
        %v2249 = vunpack.c.l.b16 %v2121
        %v2250 = vunpack.c.l.b16 %v2122
        %v2251 = vunpack.c.l.b16 %v2123
        %v2252 = vunpack.c.l.b16 %v2124
        %v2253 = vunpack.c.l.b16 %v2125
        %v2254 = vunpack.c.l.b16 %v2126
        %v2255 = vunpack.c.l.b16 %v2127
        %v2256 = vunpack.c.l.b16 %v2128
        %v2257 = vunpack.c.l.b16 %v2129
        %v2258 = vunpack.c.l.b16 %v2130
        %v2259 = vunpack.c.l.b16 %v2131
        %v2260 = vunpack.c.l.b16 %v2132
        %v2261 = vunpack.c.l.b16 %v2133
        %v2262 = vunpack.c.l.b16 %v2134
        %v2263 = vunpack.c.l.b16 %v2135
        %v2264 = vunpack.c.l.b16 %v2136
        %v2265 = vunpack.c.l.b16 %v2137
        %v2266 = vunpack.c.l.b16 %v2138
        %v2267 = vunpack.c.l.b16 %v2139
        %v2268 = vunpack.c.l.b16 %v2140
        %v2269 = vunpack.c.l.b16 %v2141
        %v2270 = vunpack.c.l.b16 %v2142
        %v2271 = vunpack.c.l.b16 %v2143
        %v2272 = vunpack.c.l.b16 %v2144
        %v2273 = vunpack.c.l.b16 %v2145
        %v2274 = vunpack.c.l.b16 %v2146
        %v2275 = vunpack.c.l.b16 %v2147
        %v2276 = vunpack.c.l.b16 %v2148
        %v2277 = vunpack.c.l.b16 %v2149
        %v2278 = vunpack.c.l.b16 %v2150
        %v2279 = vunpack.c.l.b16 %v2151
        %v2280 = vunpack.c.l.b16 %v2152
        %v2281 = vunpack.c.l.b16 %v2153
        %v2282 = vunpack.c.l.b16 %v2154
        %v2283 = vunpack.c.l.b16 %v2155
        %v2284 = vpack.c.b16 %v2221, %v2220
        %v2285 = vpack.c.b16 %v2223, %v2222
        %v2286 = vpack.c.b16 %v2225, %v2224
        %v2287 = vpack.c.b16 %v2227, %v2226
        %v2288 = vpack.c.b16 %v2229, %v2228
        %v2289 = vpack.c.b16 %v2231, %v2230
        %v2290 = vpack.c.b16 %v2233, %v2232
        %v2291 = vpack.c.b16 %v2235, %v2234
        %v2292 = vpack.c.b16 %v2237, %v2236
        %v2293 = vpack.c.b16 %v2239, %v2238
        %v2294 = vpack.c.b16 %v2241, %v2240
        %v2295 = vpack.c.b16 %v2243, %v2242
        %v2296 = vpack.c.b16 %v2245, %v2244
        %v2297 = vpack.c.b16 %v2247, %v2246
        %v2298 = vpack.c.b16 %v2249, %v2248
        %v2299 = vpack.c.b16 %v2251, %v2250
        %v2300 = vpack.c.b16 %v2253, %v2252
        %v2301 = vpack.c.b16 %v2255, %v2254
        %v2302 = vpack.c.b16 %v2257, %v2256
        %v2303 = vpack.c.b16 %v2259, %v2258
        %v2304 = vpack.c.b16 %v2261, %v2260
        %v2305 = vpack.c.b16 %v2263, %v2262
        %v2306 = vpack.c.b16 %v2265, %v2264
        %v2307 = vpack.c.b16 %v2267, %v2266
        %v2308 = vpack.c.b16 %v2269, %v2268
        %v2309 = vpack.c.b16 %v2271, %v2270
        %v2310 = vpack.c.b16 %v2273, %v2272
        %v2311 = vpack.c.b16 %v2275, %v2274
        %v2312 = vpack.c.b16 %v2277, %v2276
        %v2313 = vpack.c.b16 %v2279, %v2278
        %v2314 = vpack.c.b16 %v2281, %v2280
        %v2315 = vpack.c.b16 %v2283, %v2282
        %2348 = vmatprep.subr.bf16.mxu0 0
        %2349 = vmatpush1.bf16.msra.mxu0 %v2284
        %2350 = vmatprep.subr.bf16.mxu0 0
        %2351 = vmatpush1.bf16.msra.mxu0 %v2285
        %2352 = vmatprep.subr.bf16.mxu0 0
        %2353 = vmatpush1.bf16.msra.mxu0 %v2286
        %2354 = vmatprep.subr.bf16.mxu0 0
        %2355 = vmatpush1.bf16.msra.mxu0 %v2287
        %2356 = vmatprep.subr.bf16.mxu0 0
        %2357 = vmatpush1.bf16.msra.mxu0 %v2288
        %2358 = vmatprep.subr.bf16.mxu0 0
        %2359 = vmatpush1.bf16.msra.mxu0 %v2289
        %2360 = vmatprep.subr.bf16.mxu0 0
        %2361 = vmatpush1.bf16.msra.mxu0 %v2290
        %2362 = vmatprep.subr.bf16.mxu0 0
        %2363 = vmatpush1.bf16.msra.mxu0 %v2291
        %2364 = vmatprep.subr.bf16.mxu0 0
        %2365 = vmatpush1.bf16.msra.mxu0 %v2292
        %2366 = vmatprep.subr.bf16.mxu0 0
        %2367 = vmatpush1.bf16.msra.mxu0 %v2293
        %2368 = vmatprep.subr.bf16.mxu0 0
        %2369 = vmatpush1.bf16.msra.mxu0 %v2294
        %2370 = vmatprep.subr.bf16.mxu0 0
        %2371 = vmatpush1.bf16.msra.mxu0 %v2295
        %2372 = vmatprep.subr.bf16.mxu0 0
        %2373 = vmatpush1.bf16.msra.mxu0 %v2296
        %2374 = vmatprep.subr.bf16.mxu0 0
        %2375 = vmatpush1.bf16.msra.mxu0 %v2297
        %2376 = vmatprep.subr.bf16.mxu0 0
        %2377 = vmatpush1.bf16.msra.mxu0 %v2298
        %2378 = vmatprep.subr.bf16.mxu0 0
        %2379 = vmatpush1.bf16.msra.mxu0 %v2299
        %2380 = vmatprep.mubr.bf16.mxu0 %v2061
        %2381 = vmatmul.mubr.bf16.gmra.mrb[0].mxu0 %v2060
        %v2382 = vpop.f32.mrb[0].mxu0
        %v2383 = vadd.f32 0.0, %v2382
        %v2384 = vpop.f32.mrb[0].mxu0
        %v2385 = vpop.f32.mrb[0].mxu0
        %v2386 = vadd.f32 0.0, %v2385
        %v2387 = vpop.f32.mrb[0].mxu0
        %2388 = vmatprep.mubr.bf16.mxu0 %v2065
        %2389 = vmatmul.mubr.bf16.gmra.mrb[0].mxu0 %v2064
        %v2390 = vpop.f32.mrb[0].mxu0
        %v2391 = vadd.f32 0.0, %v2390
        %v2392 = vpop.f32.mrb[0].mxu0
        %v2393 = vpop.f32.mrb[0].mxu0
        %v2394 = vadd.f32 0.0, %v2393
        %v2395 = vpop.f32.mrb[0].mxu0
        %2396 = vmatprep.mubr.bf16.mxu0 %v2069
        %2397 = vmatmul.mubr.bf16.gmra.mrb[0].mxu0 %v2068
        %v2398 = vpop.f32.mrb[0].mxu0
        %v2399 = vadd.f32 0.0, %v2398
        %v2400 = vpop.f32.mrb[0].mxu0
        %v2401 = vpop.f32.mrb[0].mxu0
        %v2402 = vadd.f32 0.0, %v2401
        %v2403 = vpop.f32.mrb[0].mxu0
        %2404 = vmatprep.mubr.bf16.mxu0 %v2073
        %2405 = vmatmul.mubr.bf16.gmra.mrb[0].mxu0 %v2072
        %v2406 = vpop.f32.mrb[0].mxu0
        %v2407 = vadd.f32 0.0, %v2406
        %v2408 = vpop.f32.mrb[0].mxu0
        %v2409 = vpop.f32.mrb[0].mxu0
        %v2410 = vadd.f32 0.0, %v2409
        %v2411 = vpop.f32.mrb[0].mxu0
        %2412 = vmatprep.mubr.bf16.mxu0 %v2077
        %2413 = vmatmul.mubr.bf16.gmra.mrb[0].mxu0 %v2076
        %v2414 = vpop.f32.mrb[0].mxu0
        %v2415 = vadd.f32 0.0, %v2414
        %v2416 = vpop.f32.mrb[0].mxu0
        %v2417 = vpop.f32.mrb[0].mxu0
        %v2418 = vadd.f32 0.0, %v2417
        %v2419 = vpop.f32.mrb[0].mxu0
        %2420 = vmatprep.mubr.bf16.mxu0 %v2081
        %2421 = vmatmul.mubr.bf16.gmra.mrb[0].mxu0 %v2080
        %v2422 = vpop.f32.mrb[0].mxu0
        %v2423 = vadd.f32 0.0, %v2422
        %v2424 = vpop.f32.mrb[0].mxu0
        %v2425 = vpop.f32.mrb[0].mxu0
        %v2426 = vadd.f32 0.0, %v2425
        %v2427 = vpop.f32.mrb[0].mxu0
        %2428 = vmatprep.mubr.bf16.mxu0 %v2085
        %2429 = vmatmul.mubr.bf16.gmra.mrb[0].mxu0 %v2084
        %v2430 = vpop.f32.mrb[0].mxu0
        %v2431 = vadd.f32 0.0, %v2430
        %v2432 = vpop.f32.mrb[0].mxu0
        %v2433 = vpop.f32.mrb[0].mxu0
        %v2434 = vadd.f32 0.0, %v2433
        %v2435 = vpop.f32.mrb[0].mxu0
        %2436 = vmatprep.mubr.bf16.mxu0 %v2089
        %2437 = vmatmul.mubr.bf16.gmra.mrb[0].mxu0 %v2088
        %v2438 = vpop.f32.mrb[0].mxu0
        %v2439 = vadd.f32 0.0, %v2438
        %v2440 = vpop.f32.mrb[0].mxu0
        %v2441 = vpop.f32.mrb[0].mxu0
        %v2442 = vadd.f32 0.0, %v2441
        %v2443 = vpop.f32.mrb[0].mxu0
        %2444 = vdwg.mxu0
        %2445 = vmatprep.subr.bf16.mxu0 0
        %2446 = vmatpush1.bf16.msra.mxu0 %v2300
        %2447 = vmatprep.subr.bf16.mxu0 0
        %2448 = vmatpush1.bf16.msra.mxu0 %v2301
        %2449 = vmatprep.subr.bf16.mxu0 0
        %2450 = vmatpush1.bf16.msra.mxu0 %v2302
        %2451 = vmatprep.subr.bf16.mxu0 0
        %2452 = vmatpush1.bf16.msra.mxu0 %v2303
        %2453 = vmatprep.subr.bf16.mxu0 0
        %2454 = vmatpush1.bf16.msra.mxu0 %v2304
        %2455 = vmatprep.subr.bf16.mxu0 0
        %2456 = vmatpush1.bf16.msra.mxu0 %v2305
        %2457 = vmatprep.subr.bf16.mxu0 0
        %2458 = vmatpush1.bf16.msra.mxu0 %v2306
        %2459 = vmatprep.subr.bf16.mxu0 0
        %2460 = vmatpush1.bf16.msra.mxu0 %v2307
        %2461 = vmatprep.subr.bf16.mxu0 0
        %2462 = vmatpush1.bf16.msra.mxu0 %v2308
        %2463 = vmatprep.subr.bf16.mxu0 0
        %2464 = vmatpush1.bf16.msra.mxu0 %v2309
        %2465 = vmatprep.subr.bf16.mxu0 0
        %2466 = vmatpush1.bf16.msra.mxu0 %v2310
        %2467 = vmatprep.subr.bf16.mxu0 0
        %2468 = vmatpush1.bf16.msra.mxu0 %v2311
        %2469 = vmatprep.subr.bf16.mxu0 0
        %2470 = vmatpush1.bf16.msra.mxu0 %v2312
        %2471 = vmatprep.subr.bf16.mxu0 0
        %2472 = vmatpush1.bf16.msra.mxu0 %v2313
        %2473 = vmatprep.subr.bf16.mxu0 0
        %2474 = vmatpush1.bf16.msra.mxu0 %v2314
        %2475 = vmatprep.subr.bf16.mxu0 0
        %2476 = vmatpush1.bf16.msra.mxu0 %v2315
        %2477 = vmatprep.mubr.bf16.mxu0 %v2063
        %2478 = vmatmul.mubr.bf16.gmra.mrb[0].mxu0 %v2062
        %v2479 = vpop.f32.mrb[0].mxu0
        %v2480 = vadd.f32 %v2383, %v2479
        %v2481 = vpop.f32.mrb[0].mxu0
        %v2482 = vpop.f32.mrb[0].mxu0
        %v2483 = vadd.f32 %v2386, %v2482
        %v2484 = vpop.f32.mrb[0].mxu0
        %2485 = vmatprep.mubr.bf16.mxu0 %v2067
        %2486 = vmatmul.mubr.bf16.gmra.mrb[0].mxu0 %v2066
        %v2487 = vpop.f32.mrb[0].mxu0
        %v2488 = vadd.f32 %v2391, %v2487
        %v2489 = vpop.f32.mrb[0].mxu0
        %v2490 = vpop.f32.mrb[0].mxu0
        %v2491 = vadd.f32 %v2394, %v2490
        %v2492 = vpop.f32.mrb[0].mxu0
        %2493 = vmatprep.mubr.bf16.mxu0 %v2071
        %2494 = vmatmul.mubr.bf16.gmra.mrb[0].mxu0 %v2070
        %v2495 = vpop.f32.mrb[0].mxu0
        %v2496 = vadd.f32 %v2399, %v2495
        %v2497 = vpop.f32.mrb[0].mxu0
        %v2498 = vpop.f32.mrb[0].mxu0
        %v2499 = vadd.f32 %v2402, %v2498
        %v2500 = vpop.f32.mrb[0].mxu0
        %2501 = vmatprep.mubr.bf16.mxu0 %v2075
        %2502 = vmatmul.mubr.bf16.gmra.mrb[0].mxu0 %v2074
        %v2503 = vpop.f32.mrb[0].mxu0
        %v2504 = vadd.f32 %v2407, %v2503
        %v2505 = vpop.f32.mrb[0].mxu0
        %v2506 = vpop.f32.mrb[0].mxu0
        %v2507 = vadd.f32 %v2410, %v2506
        %v2508 = vpop.f32.mrb[0].mxu0
        %2509 = vmatprep.mubr.bf16.mxu0 %v2079
        %2510 = vmatmul.mubr.bf16.gmra.mrb[0].mxu0 %v2078
        %v2511 = vpop.f32.mrb[0].mxu0
        %v2512 = vadd.f32 %v2415, %v2511
        %v2513 = vpop.f32.mrb[0].mxu0
        %v2514 = vpop.f32.mrb[0].mxu0
        %v2515 = vadd.f32 %v2418, %v2514
        %v2516 = vpop.f32.mrb[0].mxu0
        %2517 = vmatprep.mubr.bf16.mxu0 %v2083
        %2518 = vmatmul.mubr.bf16.gmra.mrb[0].mxu0 %v2082
        %v2519 = vpop.f32.mrb[0].mxu0
        %v2520 = vadd.f32 %v2423, %v2519
        %v2521 = vpop.f32.mrb[0].mxu0
        %v2522 = vpop.f32.mrb[0].mxu0
        %v2523 = vadd.f32 %v2426, %v2522
        %v2524 = vpop.f32.mrb[0].mxu0
        %2525 = vmatprep.mubr.bf16.mxu0 %v2087
        %2526 = vmatmul.mubr.bf16.gmra.mrb[0].mxu0 %v2086
        %v2527 = vpop.f32.mrb[0].mxu0
        %v2528 = vadd.f32 %v2431, %v2527
        %v2529 = vpop.f32.mrb[0].mxu0
        %v2530 = vpop.f32.mrb[0].mxu0
        %v2531 = vadd.f32 %v2434, %v2530
        %v2532 = vpop.f32.mrb[0].mxu0
        %2533 = vmatprep.mubr.bf16.mxu0 %v2091
        %2534 = vmatmul.mubr.bf16.gmra.mrb[0].mxu0 %v2090
        %v2535 = vpop.f32.mrb[0].mxu0
        %v2536 = vadd.f32 %v2439, %v2535
        %v2537 = vpop.f32.mrb[0].mxu0
        %v2538 = vpop.f32.mrb[0].mxu0
        %v2539 = vadd.f32 %v2442, %v2538
        %v2540 = vpop.f32.mrb[0].mxu0
        %2541 = vdwg.mxu0
        %vm2558 = vcmask 1040384
        %v2559 = vrot.slane %v2480, 7
        %v2560 = vrot.slane %v2483, 7
        %v2561 = vsel %vm2558, %v2559, %v2560
        %v2562 = vrot.slane %v2488, 7
        %v2563 = vrot.slane %v2491, 7
        %v2564 = vsel %vm2558, %v2562, %v2563
        %v2565 = vrot.slane %v2496, 7
        %v2566 = vrot.slane %v2499, 7
        %v2567 = vsel %vm2558, %v2565, %v2566
        %v2568 = vrot.slane %v2504, 7
        %v2569 = vrot.slane %v2507, 7
        %v2570 = vsel %vm2558, %v2568, %v2569
        %v2571 = vrot.slane %v2512, 7
        %v2572 = vrot.slane %v2515, 7
        %v2573 = vsel %vm2558, %v2571, %v2572
        %v2574 = vrot.slane %v2520, 7
        %v2575 = vrot.slane %v2523, 7
        %v2576 = vsel %vm2558, %v2574, %v2575
        %v2577 = vrot.slane %v2528, 7
        %v2578 = vrot.slane %v2531, 7
        %v2579 = vsel %vm2558, %v2577, %v2578
        %v2580 = vrot.slane %v2536, 7
        %v2581 = vrot.slane %v2539, 7
        %v2582 = vsel %vm2558, %v2580, %v2581
        %v2591 = vsel %vm2558, 0.0, %v2559
        %v2592 = vsel %vm2558, 0.0, %v2562
        %v2593 = vsel %vm2558, 0.0, %v2565
        %v2594 = vsel %vm2558, 0.0, %v2568
        %v2595 = vsel %vm2558, 0.0, %v2571
        %v2596 = vsel %vm2558, 0.0, %v2574
        %v2597 = vsel %vm2558, 0.0, %v2577
        %v2598 = vsel %vm2558, 0.0, %v2580
        %vm2599 = vcmask 1046528
        %v2600 = vrot.slane %v2480, 1
        %v2601 = vrot.slane %v2483, 1
        %v2602 = vsel %vm2599, %v2600, %v2601
        %v2603 = vrot.slane %v2488, 1
        %v2604 = vrot.slane %v2491, 1
        %v2605 = vsel %vm2599, %v2603, %v2604
        %v2606 = vrot.slane %v2496, 1
        %v2607 = vrot.slane %v2499, 1
        %v2608 = vsel %vm2599, %v2606, %v2607
        %v2609 = vrot.slane %v2504, 1
        %v2610 = vrot.slane %v2507, 1
        %v2611 = vsel %vm2599, %v2609, %v2610
        %v2612 = vrot.slane %v2512, 1
        %v2613 = vrot.slane %v2515, 1
        %v2614 = vsel %vm2599, %v2612, %v2613
        %v2615 = vrot.slane %v2520, 1
        %v2616 = vrot.slane %v2523, 1
        %v2617 = vsel %vm2599, %v2615, %v2616
        %v2618 = vrot.slane %v2528, 1
        %v2619 = vrot.slane %v2531, 1
        %v2620 = vsel %vm2599, %v2618, %v2619
        %v2621 = vrot.slane %v2536, 1
        %v2622 = vrot.slane %v2539, 1
        %v2623 = vsel %vm2599, %v2621, %v2622
        %v2632 = vsel %vm2599, %v2601, 0.0
        %v2633 = vsel %vm2599, %v2604, 0.0
        %v2634 = vsel %vm2599, %v2607, 0.0
        %v2635 = vsel %vm2599, %v2610, 0.0
        %v2636 = vsel %vm2599, %v2613, 0.0
        %v2637 = vsel %vm2599, %v2616, 0.0
        %v2638 = vsel %vm2599, %v2619, 0.0
        %v2639 = vsel %vm2599, %v2622, 0.0
        %2648 = vrot.lane.b32.xlu0 %v2591, 16
        %v2649 = vpop.permute.xlu0 %2648
        %2650 = vrot.lane.b32.xlu0 %v2561, 16
        %v2651 = vpop.permute.xlu0 %2650
        %2652 = vrot.lane.b32.xlu0 %v2592, 16
        %v2653 = vpop.permute.xlu0 %2652
        %2654 = vrot.lane.b32.xlu0 %v2564, 16
        %v2655 = vpop.permute.xlu0 %2654
        %2656 = vrot.lane.b32.xlu0 %v2593, 16
        %v2657 = vpop.permute.xlu0 %2656
        %2658 = vrot.lane.b32.xlu0 %v2567, 16
        %v2659 = vpop.permute.xlu0 %2658
        %2660 = vrot.lane.b32.xlu0 %v2594, 16
        %v2661 = vpop.permute.xlu0 %2660
        %2662 = vrot.lane.b32.xlu0 %v2570, 16
        %v2663 = vpop.permute.xlu0 %2662
        %2664 = vrot.lane.b32.xlu0 %v2595, 16
        %v2665 = vpop.permute.xlu0 %2664
        %2666 = vrot.lane.b32.xlu0 %v2573, 16
        %v2667 = vpop.permute.xlu0 %2666
        %2668 = vrot.lane.b32.xlu0 %v2596, 16
        %v2669 = vpop.permute.xlu0 %2668
        %2670 = vrot.lane.b32.xlu0 %v2576, 16
        %v2671 = vpop.permute.xlu0 %2670
        %2672 = vrot.lane.b32.xlu0 %v2597, 16
        %v2673 = vpop.permute.xlu0 %2672
        %2674 = vrot.lane.b32.xlu0 %v2579, 16
        %v2675 = vpop.permute.xlu0 %2674
        %2676 = vrot.lane.b32.xlu0 %v2598, 16
        %v2677 = vpop.permute.xlu0 %2676
        %2678 = vrot.lane.b32.xlu0 %v2582, 16
        %v2679 = vpop.permute.xlu0 %2678
        %v2696 = vadd.f32 %v2480, %v2649
        %v2697 = vadd.f32 %v2483, %v2651
        %v2698 = vadd.f32 %v2488, %v2653
        %v2699 = vadd.f32 %v2491, %v2655
        %v2700 = vadd.f32 %v2496, %v2657
        %v2701 = vadd.f32 %v2499, %v2659
        %v2702 = vadd.f32 %v2504, %v2661
        %v2703 = vadd.f32 %v2507, %v2663
        %v2704 = vadd.f32 %v2512, %v2665
        %v2705 = vadd.f32 %v2515, %v2667
        %v2706 = vadd.f32 %v2520, %v2669
        %v2707 = vadd.f32 %v2523, %v2671
        %v2708 = vadd.f32 %v2528, %v2673
        %v2709 = vadd.f32 %v2531, %v2675
        %v2710 = vadd.f32 %v2536, %v2677
        %v2711 = vadd.f32 %v2539, %v2679
        %2720 = vrot.lane.b32.xlu0 %v2602, 112
        %v2721 = vpop.permute.xlu0 %2720
        %2722 = vrot.lane.b32.xlu0 %v2632, 112
        %v2723 = vpop.permute.xlu0 %2722
        %2724 = vrot.lane.b32.xlu0 %v2605, 112
        %v2725 = vpop.permute.xlu0 %2724
        %2726 = vrot.lane.b32.xlu0 %v2633, 112
        %v2727 = vpop.permute.xlu0 %2726
        %2728 = vrot.lane.b32.xlu0 %v2608, 112
        %v2729 = vpop.permute.xlu0 %2728
        %2730 = vrot.lane.b32.xlu0 %v2634, 112
        %v2731 = vpop.permute.xlu0 %2730
        %2732 = vrot.lane.b32.xlu0 %v2611, 112
        %v2733 = vpop.permute.xlu0 %2732
        %2734 = vrot.lane.b32.xlu0 %v2635, 112
        %v2735 = vpop.permute.xlu0 %2734
        %2736 = vrot.lane.b32.xlu0 %v2614, 112
        %v2737 = vpop.permute.xlu0 %2736
        %2738 = vrot.lane.b32.xlu0 %v2636, 112
        %v2739 = vpop.permute.xlu0 %2738
        %2740 = vrot.lane.b32.xlu0 %v2617, 112
        %v2741 = vpop.permute.xlu0 %2740
        %2742 = vrot.lane.b32.xlu0 %v2637, 112
        %v2743 = vpop.permute.xlu0 %2742
        %2744 = vrot.lane.b32.xlu0 %v2620, 112
        %v2745 = vpop.permute.xlu0 %2744
        %2746 = vrot.lane.b32.xlu0 %v2638, 112
        %v2747 = vpop.permute.xlu0 %2746
        %2748 = vrot.lane.b32.xlu0 %v2623, 112
        %v2749 = vpop.permute.xlu0 %2748
        %2750 = vrot.lane.b32.xlu0 %v2639, 112
        %v2751 = vpop.permute.xlu0 %2750
        %v2768 = vadd.f32 %v2696, %v2721
        %v2769 = vadd.f32 %v2697, %v2723
        %v2770 = vadd.f32 %v2698, %v2725
        %v2771 = vadd.f32 %v2699, %v2727
        %v2772 = vadd.f32 %v2700, %v2729
        %v2773 = vadd.f32 %v2701, %v2731
        %v2774 = vadd.f32 %v2702, %v2733
        %v2775 = vadd.f32 %v2703, %v2735
        %v2776 = vadd.f32 %v2704, %v2737
        %v2777 = vadd.f32 %v2705, %v2739
        %v2778 = vadd.f32 %v2706, %v2741
        %v2779 = vadd.f32 %v2707, %v2743
        %v2780 = vadd.f32 %v2708, %v2745
        %v2781 = vadd.f32 %v2709, %v2747
        %v2782 = vadd.f32 %v2710, %v2749
        %v2783 = vadd.f32 %v2711, %v2751
        %v2784 = vld [vmem:[#allocation2] sm:$0x1]
        %v2786 = vlaneseq
        %v2787 = vshrl.u32 %v2786, 7
        %v2788 = vsub.s32 0, %v2787
        %v2789 = vrot.slane %v2784, %v2788
        %2790 = vset.pattern.permute.xlu0 0
        %2791 = vperm.xlu0 %2790, %v2789
        %v2792 = vpop.permute.xlu0 %2791
        %v2794 = vadd.f32 %v2768, %v2792
        %v2795 = vadd.f32 %v2769, %v2792
        %v2796 = vadd.f32 %v2770, %v2792
        %v2797 = vadd.f32 %v2771, %v2792
        %v2798 = vadd.f32 %v2772, %v2792
        %v2799 = vadd.f32 %v2773, %v2792
        %v2800 = vadd.f32 %v2774, %v2792
        %v2801 = vadd.f32 %v2775, %v2792
        %v2802 = vadd.f32 %v2776, %v2792
        %v2803 = vadd.f32 %v2777, %v2792
        %v2804 = vadd.f32 %v2778, %v2792
        %v2805 = vadd.f32 %v2779, %v2792
        %v2806 = vadd.f32 %v2780, %v2792
        %v2807 = vadd.f32 %v2781, %v2792
        %v2808 = vadd.f32 %v2782, %v2792
        %v2809 = vadd.f32 %v2783, %v2792
        %v2810 = vtanh.pop %v2794
        %v2811 = vtanh.pop %v2795
        %v2812 = vtanh.pop %v2796
        %v2813 = vtanh.pop %v2797
        %v2814 = vtanh.pop %v2798
        %v2815 = vtanh.pop %v2799
        %v2816 = vtanh.pop %v2800
        %v2817 = vtanh.pop %v2801
        %v2818 = vtanh.pop %v2802
        %v2819 = vtanh.pop %v2803
        %v2820 = vtanh.pop %v2804
        %v2821 = vtanh.pop %v2805
        %v2822 = vtanh.pop %v2806
        %v2823 = vtanh.pop %v2807
        %v2824 = vtanh.pop %v2808
        %v2825 = vtanh.pop %v2809
        %2842 = vrot.lane.b32.xlu0 %v2810, 112
        %v2843 = vpop.permute.xlu0 %2842
        %2844 = vrot.lane.b32.xlu0 %v2811, 112
        %v2845 = vpop.permute.xlu0 %2844
        %2846 = vrot.lane.b32.xlu0 %v2812, 112
        %v2847 = vpop.permute.xlu0 %2846
        %2848 = vrot.lane.b32.xlu0 %v2813, 112
        %v2849 = vpop.permute.xlu0 %2848
        %2850 = vrot.lane.b32.xlu0 %v2814, 112
        %v2851 = vpop.permute.xlu0 %2850
        %2852 = vrot.lane.b32.xlu0 %v2815, 112
        %v2853 = vpop.permute.xlu0 %2852
        %2854 = vrot.lane.b32.xlu0 %v2816, 112
        %v2855 = vpop.permute.xlu0 %2854
        %2856 = vrot.lane.b32.xlu0 %v2817, 112
        %v2857 = vpop.permute.xlu0 %2856
        %2858 = vrot.lane.b32.xlu0 %v2818, 112
        %v2859 = vpop.permute.xlu0 %2858
        %2860 = vrot.lane.b32.xlu0 %v2819, 112
        %v2861 = vpop.permute.xlu0 %2860
        %2862 = vrot.lane.b32.xlu0 %v2820, 112
        %v2863 = vpop.permute.xlu0 %2862
        %2864 = vrot.lane.b32.xlu0 %v2821, 112
        %v2865 = vpop.permute.xlu0 %2864
        %2866 = vrot.lane.b32.xlu0 %v2822, 112
        %v2867 = vpop.permute.xlu0 %2866
        %2868 = vrot.lane.b32.xlu0 %v2823, 112
        %v2869 = vpop.permute.xlu0 %2868
        %2870 = vrot.lane.b32.xlu0 %v2824, 112
        %v2871 = vpop.permute.xlu0 %2870
        %2872 = vrot.lane.b32.xlu0 %v2825, 112
        %v2873 = vpop.permute.xlu0 %2872
        %v2890 = vcombine.low %v2843, %v2851
        %v2891 = vcombine.high %v2843, %v2851
        %v2893 = vunpack.c.l.s4 1983009808
        %v2894 = vunpack.c.0.s8 %v2893
        %v2895 = vlaneseq
        %v2896 = vshrl.u32 %v2895, 7
        %v2897 = vsub.s32 %v2894, %v2896
        %v2898 = vrot.slane %v2890, %v2897
        %v2900 = vunpack.c.l.s4 1983009808
        %v2901 = vunpack.c.0.s8 %v2900
        %v2902 = vlaneseq
        %v2903 = vshrl.u32 %v2902, 7
        %v2904 = vsub.s32 %v2901, %v2903
        %v2905 = vrot.slane %v2891, %v2904
        %v2906 = vcombine.low %v2847, %v2855
        %v2907 = vcombine.high %v2847, %v2855
        %v2909 = vunpack.c.l.s4 1983009808
        %v2910 = vunpack.c.0.s8 %v2909
        %v2911 = vlaneseq
        %v2912 = vshrl.u32 %v2911, 7
        %v2913 = vsub.s32 %v2910, %v2912
        %v2914 = vrot.slane %v2906, %v2913
        %v2916 = vunpack.c.l.s4 1983009808
        %v2917 = vunpack.c.0.s8 %v2916
        %v2918 = vlaneseq
        %v2919 = vshrl.u32 %v2918, 7
        %v2920 = vsub.s32 %v2917, %v2919
        %v2921 = vrot.slane %v2907, %v2920
        %v2922 = vcombine.low %v2859, %v2867
        %v2923 = vcombine.high %v2859, %v2867
        %v2925 = vunpack.c.l.s4 1983009808
        %v2926 = vunpack.c.0.s8 %v2925
        %v2927 = vlaneseq
        %v2928 = vshrl.u32 %v2927, 7
        %v2929 = vsub.s32 %v2926, %v2928
        %v2930 = vrot.slane %v2922, %v2929
        %v2932 = vunpack.c.l.s4 1983009808
        %v2933 = vunpack.c.0.s8 %v2932
        %v2934 = vlaneseq
        %v2935 = vshrl.u32 %v2934, 7
        %v2936 = vsub.s32 %v2933, %v2935
        %v2937 = vrot.slane %v2923, %v2936
        %v2938 = vcombine.low %v2863, %v2871
        %v2939 = vcombine.high %v2863, %v2871
        %v2941 = vunpack.c.l.s4 1983009808
        %v2942 = vunpack.c.0.s8 %v2941
        %v2943 = vlaneseq
        %v2944 = vshrl.u32 %v2943, 7
        %v2945 = vsub.s32 %v2942, %v2944
        %v2946 = vrot.slane %v2938, %v2945
        %v2948 = vunpack.c.l.s4 1983009808
        %v2949 = vunpack.c.0.s8 %v2948
        %v2950 = vlaneseq
        %v2951 = vshrl.u32 %v2950, 7
        %v2952 = vsub.s32 %v2949, %v2951
        %v2953 = vrot.slane %v2939, %v2952
        %v2954 = vcombine.low %v2898, %v2914
        %v2955 = vcombine.high %v2898, %v2914
        %v2957 = vunpack.c.l.s4 1934713408
        %v2958 = vunpack.c.0.s8 %v2957
        %v2959 = vlaneseq
        %v2960 = vshrl.u32 %v2959, 7
        %v2961 = vsub.s32 %v2958, %v2960
        %v2962 = vrot.slane %v2954, %v2961
        %v2964 = vunpack.c.l.s4 1934713408
        %v2965 = vunpack.c.0.s8 %v2964
        %v2966 = vlaneseq
        %v2967 = vshrl.u32 %v2966, 7
        %v2968 = vsub.s32 %v2965, %v2967
        %v2969 = vrot.slane %v2955, %v2968
        %v2970 = vcombine.low %v2905, %v2921
        %v2971 = vcombine.high %v2905, %v2921
        %v2973 = vunpack.c.l.s4 1934713408
        %v2974 = vunpack.c.0.s8 %v2973
        %v2975 = vlaneseq
        %v2976 = vshrl.u32 %v2975, 7
        %v2977 = vsub.s32 %v2974, %v2976
        %v2978 = vrot.slane %v2970, %v2977
        %v2980 = vunpack.c.l.s4 1934713408
        %v2981 = vunpack.c.0.s8 %v2980
        %v2982 = vlaneseq
        %v2983 = vshrl.u32 %v2982, 7
        %v2984 = vsub.s32 %v2981, %v2983
        %v2985 = vrot.slane %v2971, %v2984
        %v2986 = vcombine.low %v2930, %v2946
        %v2987 = vcombine.high %v2930, %v2946
        %v2989 = vunpack.c.l.s4 1934713408
        %v2990 = vunpack.c.0.s8 %v2989
        %v2991 = vlaneseq
        %v2992 = vshrl.u32 %v2991, 7
        %v2993 = vsub.s32 %v2990, %v2992
        %v2994 = vrot.slane %v2986, %v2993
        %v2996 = vunpack.c.l.s4 1934713408
        %v2997 = vunpack.c.0.s8 %v2996
        %v2998 = vlaneseq
        %v2999 = vshrl.u32 %v2998, 7
        %v3000 = vsub.s32 %v2997, %v2999
        %v3001 = vrot.slane %v2987, %v3000
        %v3002 = vcombine.low %v2937, %v2953
        %v3003 = vcombine.high %v2937, %v2953
        %v3005 = vunpack.c.l.s4 1934713408
        %v3006 = vunpack.c.0.s8 %v3005
        %v3007 = vlaneseq
        %v3008 = vshrl.u32 %v3007, 7
        %v3009 = vsub.s32 %v3006, %v3008
        %v3010 = vrot.slane %v3002, %v3009
        %v3012 = vunpack.c.l.s4 1934713408
        %v3013 = vunpack.c.0.s8 %v3012
        %v3014 = vlaneseq
        %v3015 = vshrl.u32 %v3014, 7
        %v3016 = vsub.s32 %v3013, %v3015
        %v3017 = vrot.slane %v3003, %v3016
        %v3018 = vcombine.low %v2962, %v2994
        %v3019 = vcombine.high %v2962, %v2994
        %v3020 = vcombine.low %v2969, %v3001
        %v3021 = vcombine.high %v2969, %v3001
        %v3022 = vcombine.low %v2978, %v3010
        %v3023 = vcombine.high %v2978, %v3010
        %v3024 = vcombine.low %v2985, %v3017
        %v3025 = vcombine.high %v2985, %v3017
        %v3026 = vcombine.low %v2845, %v2853
        %v3027 = vcombine.high %v2845, %v2853
        %v3029 = vunpack.c.l.s4 1983009808
        %v3030 = vunpack.c.0.s8 %v3029
        %v3031 = vlaneseq
        %v3032 = vshrl.u32 %v3031, 7
        %v3033 = vsub.s32 %v3030, %v3032
        %v3034 = vrot.slane %v3026, %v3033
        %v3036 = vunpack.c.l.s4 1983009808
        %v3037 = vunpack.c.0.s8 %v3036
        %v3038 = vlaneseq
        %v3039 = vshrl.u32 %v3038, 7
        %v3040 = vsub.s32 %v3037, %v3039
        %v3041 = vrot.slane %v3027, %v3040
        %v3042 = vcombine.low %v2849, %v2857
        %v3043 = vcombine.high %v2849, %v2857
        %v3045 = vunpack.c.l.s4 1983009808
        %v3046 = vunpack.c.0.s8 %v3045
        %v3047 = vlaneseq
        %v3048 = vshrl.u32 %v3047, 7
        %v3049 = vsub.s32 %v3046, %v3048
        %v3050 = vrot.slane %v3042, %v3049
        %v3052 = vunpack.c.l.s4 1983009808
        %v3053 = vunpack.c.0.s8 %v3052
        %v3054 = vlaneseq
        %v3055 = vshrl.u32 %v3054, 7
        %v3056 = vsub.s32 %v3053, %v3055
        %v3057 = vrot.slane %v3043, %v3056
        %v3058 = vcombine.low %v2861, %v2869
        %v3059 = vcombine.high %v2861, %v2869
        %v3061 = vunpack.c.l.s4 1983009808
        %v3062 = vunpack.c.0.s8 %v3061
        %v3063 = vlaneseq
        %v3064 = vshrl.u32 %v3063, 7
        %v3065 = vsub.s32 %v3062, %v3064
        %v3066 = vrot.slane %v3058, %v3065
        %v3068 = vunpack.c.l.s4 1983009808
        %v3069 = vunpack.c.0.s8 %v3068
        %v3070 = vlaneseq
        %v3071 = vshrl.u32 %v3070, 7
        %v3072 = vsub.s32 %v3069, %v3071
        %v3073 = vrot.slane %v3059, %v3072
        %v3074 = vcombine.low %v2865, %v2873
        %v3075 = vcombine.high %v2865, %v2873
        %v3077 = vunpack.c.l.s4 1983009808
        %v3078 = vunpack.c.0.s8 %v3077
        %v3079 = vlaneseq
        %v3080 = vshrl.u32 %v3079, 7
        %v3081 = vsub.s32 %v3078, %v3080
        %v3082 = vrot.slane %v3074, %v3081
        %v3084 = vunpack.c.l.s4 1983009808
        %v3085 = vunpack.c.0.s8 %v3084
        %v3086 = vlaneseq
        %v3087 = vshrl.u32 %v3086, 7
        %v3088 = vsub.s32 %v3085, %v3087
        %v3089 = vrot.slane %v3075, %v3088
        %v3090 = vcombine.low %v3034, %v3050
        %v3091 = vcombine.high %v3034, %v3050
        %v3093 = vunpack.c.l.s4 1934713408
        %v3094 = vunpack.c.0.s8 %v3093
        %v3095 = vlaneseq
        %v3096 = vshrl.u32 %v3095, 7
        %v3097 = vsub.s32 %v3094, %v3096
        %v3098 = vrot.slane %v3090, %v3097
        %v3100 = vunpack.c.l.s4 1934713408
        %v3101 = vunpack.c.0.s8 %v3100
        %v3102 = vlaneseq
        %v3103 = vshrl.u32 %v3102, 7
        %v3104 = vsub.s32 %v3101, %v3103
        %v3105 = vrot.slane %v3091, %v3104
        %v3106 = vcombine.low %v3041, %v3057
        %v3107 = vcombine.high %v3041, %v3057
        %v3109 = vunpack.c.l.s4 1934713408
        %v3110 = vunpack.c.0.s8 %v3109
        %v3111 = vlaneseq
        %v3112 = vshrl.u32 %v3111, 7
        %v3113 = vsub.s32 %v3110, %v3112
        %v3114 = vrot.slane %v3106, %v3113
        %v3116 = vunpack.c.l.s4 1934713408
        %v3117 = vunpack.c.0.s8 %v3116
        %v3118 = vlaneseq
        %v3119 = vshrl.u32 %v3118, 7
        %v3120 = vsub.s32 %v3117, %v3119
        %v3121 = vrot.slane %v3107, %v3120
        %v3122 = vcombine.low %v3066, %v3082
        %v3123 = vcombine.high %v3066, %v3082
        %v3125 = vunpack.c.l.s4 1934713408
        %v3126 = vunpack.c.0.s8 %v3125
        %v3127 = vlaneseq
        %v3128 = vshrl.u32 %v3127, 7
        %v3129 = vsub.s32 %v3126, %v3128
        %v3130 = vrot.slane %v3122, %v3129
        %v3132 = vunpack.c.l.s4 1934713408
        %v3133 = vunpack.c.0.s8 %v3132
        %v3134 = vlaneseq
        %v3135 = vshrl.u32 %v3134, 7
        %v3136 = vsub.s32 %v3133, %v3135
        %v3137 = vrot.slane %v3123, %v3136
        %v3138 = vcombine.low %v3073, %v3089
        %v3139 = vcombine.high %v3073, %v3089
        %v3141 = vunpack.c.l.s4 1934713408
        %v3142 = vunpack.c.0.s8 %v3141
        %v3143 = vlaneseq
        %v3144 = vshrl.u32 %v3143, 7
        %v3145 = vsub.s32 %v3142, %v3144
        %v3146 = vrot.slane %v3138, %v3145
        %v3148 = vunpack.c.l.s4 1934713408
        %v3149 = vunpack.c.0.s8 %v3148
        %v3150 = vlaneseq
        %v3151 = vshrl.u32 %v3150, 7
        %v3152 = vsub.s32 %v3149, %v3151
        %v3153 = vrot.slane %v3139, %v3152
        %v3154 = vcombine.low %v3098, %v3130
        %v3155 = vcombine.high %v3098, %v3130
        %v3156 = vcombine.low %v3105, %v3137
        %v3157 = vcombine.high %v3105, %v3137
        %v3158 = vcombine.low %v3114, %v3146
        %v3159 = vcombine.high %v3114, %v3146
        %v3160 = vcombine.low %v3121, %v3153
        %v3161 = vcombine.high %v3121, %v3153
        %3163 = vrot.lane.b32.xlu0 %v3019, 16
        %v3164 = vpop.permute.xlu0 %3163
        %3167 = vrot.lane.b32.xlu0 %v3020, 32
        %v3168 = vpop.permute.xlu0 %3167
        %3171 = vrot.lane.b32.xlu0 %v3021, 48
        %v3172 = vpop.permute.xlu0 %3171
        %3175 = vrot.lane.b32.xlu0 %v3022, 64
        %v3176 = vpop.permute.xlu0 %3175
        %3179 = vrot.lane.b32.xlu0 %v3023, 80
        %v3180 = vpop.permute.xlu0 %3179
        %3183 = vrot.lane.b32.xlu0 %v3024, 96
        %v3184 = vpop.permute.xlu0 %3183
        %3187 = vrot.lane.b32.xlu0 %v3025, 112
        %v3188 = vpop.permute.xlu0 %3187
        %3191 = vrot.lane.b32.xlu0 %v3155, 16
        %v3192 = vpop.permute.xlu0 %3191
        %3195 = vrot.lane.b32.xlu0 %v3156, 32
        %v3196 = vpop.permute.xlu0 %3195
        %3199 = vrot.lane.b32.xlu0 %v3157, 48
        %v3200 = vpop.permute.xlu0 %3199
        %3203 = vrot.lane.b32.xlu0 %v3158, 64
        %v3204 = vpop.permute.xlu0 %3203
        %3207 = vrot.lane.b32.xlu0 %v3159, 80
        %v3208 = vpop.permute.xlu0 %3207
        %3211 = vrot.lane.b32.xlu0 %v3160, 96
        %v3212 = vpop.permute.xlu0 %3211
        %3215 = vrot.lane.b32.xlu0 %v3161, 112
        %v3216 = vpop.permute.xlu0 %3215
        %v3218 = vsel %vm1293, %v3018, %v3164
        %vm3219 = vcmask 261120
        %v3220 = vsel %vm3219, %v3218, %v3168
        %vm3221 = vcmask 392192
        %v3222 = vsel %vm3221, %v3220, %v3172
        %vm3223 = vcmask 523264
        %v3224 = vsel %vm3223, %v3222, %v3176
        %vm3225 = vcmask 654336
        %v3226 = vsel %vm3225, %v3224, %v3180
        %vm3227 = vcmask 785408
        %v3228 = vsel %vm3227, %v3226, %v3184
        %vm3229 = vcmask 916480
        %v3230 = vsel %vm3229, %v3228, %v3188
        %v3231 = vsel %vm1293, %v3154, %v3192
        %v3232 = vsel %vm3219, %v3231, %v3196
        %v3233 = vsel %vm3221, %v3232, %v3200
        %v3234 = vsel %vm3223, %v3233, %v3204
        %v3235 = vsel %vm3225, %v3234, %v3208
        %v3236 = vsel %vm3227, %v3235, %v3212
        %v3237 = vsel %vm3229, %v3236, %v3216
        %3238 = vst [vmem:[%s222] sm:$0xff] %v3230
        %3239 = vst [vmem:[%s222 + $0x8] sm:$0xff] %v3237
        %s3240 = sand.u32 %s139, 1
        %s3241 = scalar_lea.sflag [#allocation4], %s3240
        %s3242 = sand.u32 %s139, 1
        %s3243 = smul.addr %s3242, 16
        %s3244 = scalar_lea.vmem [#allocation3], %s3243
        // Predicated region
        $region41: #{tpu_custom_call.1} parent=39 // pred_check
          %p3245 = pneg %p149
        $region42: #{tpu_custom_call.1} parent=39 // pred_check_branch
          %3247 = sbr.rel (%p3245) target = $region44
        $region43: #{tpu_custom_call.1} parent=39 // pred_region
          %s3249 = ssub.s32 256, 256
          %3250 = vsyncadd %s3241, %s3249
          %s3251 = smul.addr %s21, 2
          %s3252 = smul.addr %s3251, 128
          %s3253 = scalar_lea.hbm %s5, %s3252
          %s3255 = sshll.u32 %s3244, 4
          %s3256 = int_to_ptr.vmem [resolvable:$true] %s3255
          %3258 = dma.vmem_to_hbm [thread:$0]  %s3256, 256, %s3253, %s3241
        $region44: #{tpu_custom_call.1} parent=39 // pred_fallthru
          _
      $region40: #{tpu_custom_call.1} parent=5 // pred_fallthru
        _
      %p3259 = scmp.le.s32.totalorder 2, %s16
      // Predicated region
      $region45: #{tpu_custom_call.1} parent=5 // pred_check
        %p3260 = pneg %p3259
      $region46: #{tpu_custom_call.1} parent=5 // pred_check_branch
        %3262 = sbr.rel (%p3260) target = $region48
      $region47: #{tpu_custom_call.1} parent=5 // pred_region
        %s3263 = ssub.s32 %s16, 2
        // Predicated region
        $region49: #{tpu_custom_call.1} parent=47 // pred_check
          %p3264 = pneg %p155
        $region50: #{tpu_custom_call.1} parent=47 // pred_check_branch
          %3266 = sbr.rel (%p3264) target = $region52
        $region51: #{tpu_custom_call.1} parent=47 // pred_region
          %s3267 = sand.u32 %s140, 1
          %s3268 = scalar_lea.sflag [#allocation4], %s3267
          %s3269 = sand.u32 %s140, 1
          %s3270 = smul.addr %s3269, 16
          %s3271 = scalar_lea.vmem [#allocation3], %s3270
          %3272 = dma.done %s3268, 256
        $region52: #{tpu_custom_call.1} parent=47 // pred_fallthru
          _
      $region48: #{tpu_custom_call.1} parent=5 // pred_fallthru
        _
    $region6: #{tpu_custom_call.1} parent=1 // loop_footer
      %s20 = sadd.s32 1, %s16
    $region7: #{tpu_custom_call.1} parent=1 // loop_footer_branch
      %15 = sbr.rel target = $region3
    $region8: #{tpu_custom_call.1} parent=1 // loop_exit
      _
    %3273 = vsyncpa [#allocation4], 1
    %s3274 = scalar_lea.sflag [#allocation4], 1
    %3275 = vsyncpa %s3274, 1

</llo_original>
